<compile_context>
chip_gen: v5e
topology: v5e:2x2
jax: 0.10.0
libtpu: 0.0.40
codegen_flags: <defaults>
</compile_context>

<pallas_src>
import functools
import math

import jax
import jax.numpy as jnp
from jax import lax
from jax.experimental import pallas as pl
from jax.experimental.pallas import tpu as pltpu


# ----------------------------- kernel 1: fused QKV projection ----------------
def _qkv_proj_kernel(x_ref, wqkv_ref, bqkv_ref, q_ref, k_ref, v_ref, *,
                     num_heads, d_k, compute_dtype):
    """x_ref: (1, ts, D); wqkv_ref: (D, 3D) in compute_dtype; bqkv_ref: (1, 3D)
    f32; q/k/v_ref: (1, H, ts, d_k) in compute_dtype.
    Wq/bq already carry the 1/sqrt(d_k) attention scale (folded on the host)."""
    x = x_ref[0].astype(compute_dtype)                 # (ts, D) MXU input dtype
    ts = x.shape[0]
    D = num_heads * d_k

    # One wide MXU pass for all three projections, f32 accumulation.
    qkv = jnp.dot(x, wqkv_ref[...], preferred_element_type=jnp.float32)
    qkv = qkv + bqkv_ref[0]                            # (ts, 3D) f32

    def to_heads(m):                                   # (ts, D) -> (H, ts, d_k)
        return m.reshape(ts, num_heads, d_k).transpose(1, 0, 2)

    q_ref[0] = to_heads(qkv[:, :D]).astype(q_ref.dtype)
    k_ref[0] = to_heads(qkv[:, D:2 * D]).astype(k_ref.dtype)
    v_ref[0] = to_heads(qkv[:, 2 * D:]).astype(v_ref.dtype)


# ------------------- kernel 2: attention + output projection -----------------
def _attn_kernel(q_ref, k_ref, v_ref, wo_ref, bo_ref, *out_refs,
                 q_tile, with_attn):
    """q_ref: (1, H, tq, d_k) pre-scaled; k/v_ref: (1, H, S, d_k);
    wo_ref: (D, D) compute dtype; bo_ref: (1, D) f32;
    out_refs: y (1, tq, D) [+ attn (1, H, tq, S) when with_attn]."""
    y_ref = out_refs[0]
    attn_ref = out_refs[1] if with_attn else None
    qi = pl.program_id(1)

    q = q_ref[0]                                       # (H, tq, d_k)
    k = k_ref[0]                                       # (H, S,  d_k)
    v = v_ref[0]                                       # (H, S,  d_k)
    num_heads, tq, d_k = q.shape
    S = k.shape[1]

    # Batched per-head scores (head-leading batch dim, no k.T); f32 accumulate.
    s = jnp.einsum("hqd,hkd->hqk", q, k,
                   preferred_element_type=jnp.float32)           # (H, tq, S)

    # Causal mask for this q tile: global query row = qi*q_tile + local row.
    row = lax.broadcasted_iota(jnp.int32, (tq, S), 0) + qi * q_tile
    col = lax.broadcasted_iota(jnp.int32, (tq, S), 1)
    s = jnp.where((col <= row)[None, :, :], s, jnp.float32(-1e9))

    # Numerically stable softmax (all f32).  The reciprocal of the small
    # (H, tq, 1) denominator goes to the EUP (approx) and one Newton step
    # restores full f32 accuracy, avoiding an (H, tq, S) VALU divide.
    m = jnp.max(s, axis=-1, keepdims=True)
    e = jnp.exp(s - m)
    denom = jnp.sum(e, axis=-1, keepdims=True)
    inv = pl.reciprocal(denom, approx=True)
    inv = inv * (2.0 - denom * inv)
    p = e * inv                                                  # (H, tq, S)

    if with_attn:
        # Lane-dense (last dim = S) store; the HBM writeback of the previous
        # q tile overlaps this tile's einsums via the output pipeline.
        attn_ref[0] = p.astype(attn_ref.dtype)

    # Batched PV matmul (bf16 inputs on the fast path, f32 accumulation),
    # fold heads back into the feature axis, output projection for this tile.
    o = jnp.einsum("hqk,hkd->hqd", p.astype(v.dtype), v,
                   preferred_element_type=jnp.float32)           # (H, tq, d_k)
    out = o.transpose(1, 0, 2).reshape(tq, num_heads * d_k)      # (tq, D)
    y = jnp.dot(out.astype(wo_ref.dtype), wo_ref[...],
                preferred_element_type=jnp.float32) + bo_ref[0]
    y_ref[0] = y.astype(y_ref.dtype)


# ------------------------------- tiling helpers -------------------------------
def _vmem_limit_bytes():
    """Generation-aware scoped-VMEM limit: ~3/4 of physical capacity, capped at
    96 MiB (v5e/v6e have 128 MiB, v7x only 64 MiB -> ~48 MiB)."""
    try:
        cap = int(pltpu.get_tpu_info().vmem_capacity_bytes)
    except Exception:
        cap = 64 * 1024 * 1024          # conservative (v7x-sized) default
    return max(32 * 1024 * 1024, min(96 * 1024 * 1024, (cap * 3) // 4))


def _largest_row_tile(S, max_rows):
    """Largest multiple of 8 that divides S and is <= max_rows (or S itself
    when S is small / not 8-divisible, to satisfy the (8,128) block rule)."""
    if S <= max_rows or S % 8 != 0:
        return S
    best = 8
    for t in range(8, min(int(max_rows), S) + 1, 8):
        if S % t == 0:
            best = t
    return best


def _choose_q_tile(S, num_heads, D, d_k, *, vmem_budget, attn_itemsize,
                   compute_itemsize, return_attention):
    """Pick the q tile for the attention kernel from a real VMEM budget:
    single-buffered K/V + Wo residency (fixed), plus per-query-row cost of the
    double-buffered attn output block, ~3 live (H, S) f32 softmax temporaries
    (s, e, p) and the q / y blocks."""
    fixed = 2 * num_heads * S * d_k * compute_itemsize     # K + V (1 buffer)
    fixed += D * D * compute_itemsize                      # Wo (1 buffer)
    avail = max(vmem_budget - fixed, 4 * 1024 * 1024)
    per_row = num_heads * S * (
        (2 * attn_itemsize if return_attention else 0) + 3 * 4)
    per_row += 2 * num_heads * d_k * compute_itemsize + 2 * D * 4
    max_rows = max(8, avail // per_row)
    return _largest_row_tile(S, max_rows)


def _choose_proj_tile(S, D, *, vmem_budget, compute_itemsize):
    """Row tile for the QKV projection kernel (no S^2 term, so much larger)."""
    fixed = 3 * D * D * compute_itemsize                   # Wqkv (1 buffer)
    avail = max(vmem_budget - fixed, 4 * 1024 * 1024)
    per_row = 2 * D * 4 + 2 * 3 * D * compute_itemsize + 3 * D * 4
    max_rows = max(8, min(avail // per_row, 2048))
    return _largest_row_tile(S, max_rows)


# ---------------------------------- wrapper -----------------------------------
def causal_self_attention(x, params, *, num_heads,
                          compute_dtype=jnp.bfloat16,
                          attn_dtype=jnp.float32,
                          return_attention=True,
                          q_tile=None):
    """x: (B, S, D).  params: PyTorch-style Linear weights (out,in) / biases.

    Returns (y, attention) like the PyTorch module; attention is None when
    return_attention=False (skips the dominant (B,H,S,S) HBM writeback)."""
    B, S, D = x.shape
    d_k = D // num_heads
    inv_temp = 1.0 / math.sqrt(d_k)

    # PyTorch Linear computes x @ W^T + b: pre-transpose on the host, fuse the
    # three QKV projections into one (D, 3D) weight, fold the 1/sqrt(d_k) scale
    # into Wq/bq (exact), and cast weights to the MXU input dtype on the host
    # (halves their HBM->VMEM traffic and VMEM footprint on the bf16 path).
    wqkv = jnp.concatenate(
        [params["wq"].T * inv_temp, params["wk"].T, params["wv"].T],
        axis=1).astype(compute_dtype)
    bqkv = jnp.concatenate(
        [params["bq"] * inv_temp, params["bk"], params["bv"]]
    ).reshape(1, 3 * D).astype(jnp.float32)
    wo_t = params["wo"].T.astype(compute_dtype)
    bo = params["bo"].reshape(1, D).astype(jnp.float32)

    vmem_limit = _vmem_limit_bytes()
    cd_size = jnp.dtype(compute_dtype).itemsize
    attn_size = jnp.dtype(attn_dtype).itemsize

    if q_tile is None:
        q_tile = _choose_q_tile(
            S, num_heads, D, d_k, vmem_budget=vmem_limit,
            attn_itemsize=attn_size, compute_itemsize=cd_size,
            return_attention=return_attention)
    assert S % q_tile == 0, "q_tile must divide the sequence length"
    n_q = S // q_tile

    s_tile = _choose_proj_tile(S, D, vmem_budget=vmem_limit,
                               compute_itemsize=cd_size)
    n_s = S // s_tile

    def run(use_buffered):
        def spec(shape, index_map, *, invariant=False):
            # Grid-invariant (or qi-invariant) operands: single-buffer instead
            # of Pallas' default double buffering (their block index never
            # changes within the axis that matters, so no overlap is lost).
            if use_buffered and invariant:
                return pl.BlockSpec(shape, index_map,
                                    pipeline_mode=pl.Buffered(1))
            return pl.BlockSpec(shape, index_map)

        # --- Kernel 1: fused QKV projection into (B, H, S, d_k) layout ---
        head_shape = jax.ShapeDtypeStruct((B, num_heads, S, d_k), compute_dtype)
        q, k, v = pl.pallas_call(
            functools.partial(_qkv_proj_kernel, num_heads=num_heads, d_k=d_k,
                              compute_dtype=compute_dtype),
            out_shape=(head_shape, head_shape, head_shape),
            grid_spec=pltpu.PrefetchScalarGridSpec(
                num_scalar_prefetch=0,
                grid=(B, n_s),
                in_specs=[
                    spec((1, s_tile, D), lambda b, s: (b, s, 0)),          # x
                    spec((D, 3 * D), lambda b, s: (0, 0), invariant=True),  # Wqkv
                    spec((1, 3 * D), lambda b, s: (0, 0), invariant=True),  # bqkv
                ],
                out_specs=[
                    spec((1, num_heads, s_tile, d_k), lambda b, s: (b, 0, s, 0)),
                ] * 3,
            ),
            compiler_params=pltpu.CompilerParams(
                dimension_semantics=("parallel", "parallel"),
                vmem_limit_bytes=vmem_limit),
        )(x, wqkv, bqkv)

        # --- Kernel 2: per-(batch, q-tile) attention + output projection ---
        # Megacore axis choice: with B >= 2 shard the batch across TensorCores
        # (keeps each batch's K/V resident and read once per core); only when
        # B == 1 is the qi axis allowed to split across cores.
        sem2 = ("parallel", "arbitrary") if B > 1 else ("parallel", "parallel")

        out_shapes = [jax.ShapeDtypeStruct((B, S, D), x.dtype)]
        out_specs = [spec((1, q_tile, D), lambda b, qi: (b, qi, 0))]
        if return_attention:
            out_shapes.append(
                jax.ShapeDtypeStruct((B, num_heads, S, S), attn_dtype))
            out_specs.append(
                spec((1, num_heads, q_tile, S), lambda b, qi: (b, 0, qi, 0)))

        outs = pl.pallas_call(
            functools.partial(_attn_kernel, q_tile=q_tile,
                              with_attn=return_attention),
            out_shape=tuple(out_shapes),
            grid_spec=pltpu.PrefetchScalarGridSpec(
                num_scalar_prefetch=0,
                grid=(B, n_q),
                in_specs=[
                    spec((1, num_heads, q_tile, d_k),
                         lambda b, qi: (b, 0, qi, 0)),                    # q tile
                    spec((1, num_heads, S, d_k), lambda b, qi: (b, 0, 0, 0),
                         invariant=True),                                 # K
                    spec((1, num_heads, S, d_k), lambda b, qi: (b, 0, 0, 0),
                         invariant=True),                                 # V
                    spec((D, D), lambda b, qi: (0, 0), invariant=True),   # Wo^T
                    spec((1, D), lambda b, qi: (0, 0), invariant=True),   # bo
                ],
                out_specs=out_specs,
            ),
            compiler_params=pltpu.CompilerParams(
                dimension_semantics=sem2, vmem_limit_bytes=vmem_limit),
        )(q, k, v, wo_t, bo)

        if not isinstance(outs, (list, tuple)):
            outs = (outs,)
        if return_attention:
            return outs[0], outs[1]
        return outs[0], None

    try:
        return run(True)
    except Exception:
        # Fallback for JAX versions where pipeline_mode=pl.Buffered(1) is not
        # supported on pallas_call BlockSpecs; everything else is unchanged.
        return run(False)


# ------------------------------ pure-JAX reference ----------------------------
def _ref_forward(x, params, num_heads):
    """Mirrors the PyTorch module (eval mode)."""
    B, S, D = x.shape
    d_k = D // num_heads

    def lin(a, w, b):
        return a @ w.T + b

    q = lin(x, params["wq"], params["bq"]).reshape(B, S, num_heads, d_k).transpose(0, 2, 1, 3)
    k = lin(x, params["wk"], params["bk"]).reshape(B, S, num_heads, d_k).transpose(0, 2, 1, 3)
    v = lin(x, params["wv"], params["bv"]).reshape(B, S, num_heads, d_k).transpose(0, 2, 1, 3)

    scores = jnp.einsum("bhqd,bhkd->bhqk", q / math.sqrt(d_k), k)
    mask = jnp.tril(jnp.ones((S, S), bool))
    scores = jnp.where(mask[None, None], scores, -1e9)
    attn = jax.nn.softmax(scores, axis=-1)
    out = jnp.einsum("bhqk,bhkd->bhqd", attn, v)
    out = out.transpose(0, 2, 1, 3).reshape(B, S, D)
    y = lin(out, params["wo"], params["bo"])
    return y, attn


if __name__ == "__main__":
    batch_size, seq_len, d_model, num_heads = 2, 8, 32, 8

    key = jax.random.PRNGKey(0)
    kx, kq, kk, kv, ko, kbq, kbk, kbv, kbo = jax.random.split(key, 9)

    x = jax.random.normal(kx, (batch_size, seq_len, d_model), jnp.float32)

    # PyTorch-Linear-style parameters: weight (out, in), bias (out,)
    bound = 1.0 / math.sqrt(d_model)
    params = {
        "wq": jax.random.uniform(kq, (d_model, d_model), jnp.float32, -bound, bound),
        "wk": jax.random.uniform(kk, (d_model, d_model), jnp.float32, -bound, bound),
        "wv": jax.random.uniform(kv, (d_model, d_model), jnp.float32, -bound, bound),
        "wo": jax.random.uniform(ko, (d_model, d_model), jnp.float32, -bound, bound),
        "bq": jax.random.uniform(kbq, (d_model,), jnp.float32, -bound, bound),
        "bk": jax.random.uniform(kbk, (d_model,), jnp.float32, -bound, bound),
        "bv": jax.random.uniform(kbv, (d_model,), jnp.float32, -bound, bound),
        "bo": jax.random.uniform(kbo, (d_model,), jnp.float32, -bound, bound),
    }

    y_ref, attn_ref = _ref_forward(x, params, num_heads)

    # 1) Exact-parity path: f32 everywhere (matches the PyTorch module).
    y, attn = causal_self_attention(x, params, num_heads=num_heads,
                                    compute_dtype=jnp.float32)
    y, attn = jax.block_until_ready((y, attn))
    assert y.shape == (batch_size, seq_len, d_model)
    assert attn.shape == (batch_size, num_heads, seq_len, seq_len)
    assert jnp.allclose(y, y_ref, atol=1e-4, rtol=1e-4)
    assert jnp.allclose(attn, attn_ref, atol=1e-5, rtol=1e-5)

    # 2) Fast path (default): bf16 MXU inputs / storage, f32 accumulation and
    #    softmax, bf16 attention writeback (relaxed tolerances).
    y16, attn16 = causal_self_attention(x, params, num_heads=num_heads,
                                        attn_dtype=jnp.bfloat16)
    y16, attn16 = jax.block_until_ready((y16, attn16))
    assert jnp.allclose(y16.astype(jnp.float32), y_ref, atol=5e-2, rtol=5e-2)
    assert jnp.allclose(attn16.astype(jnp.float32), attn_ref, atol=3e-2, rtol=3e-2)

    # 3) y-only path: skips the dominant (B,H,S,S) attention writeback.
    y_only, attn_none = causal_self_attention(
        x, params, num_heads=num_heads, compute_dtype=jnp.float32,
        return_attention=False)
    y_only = jax.block_until_ready(y_only)
    assert attn_none is None
    assert jnp.allclose(y_only, y_ref, atol=1e-4, rtol=1e-4)

    print("KERNEL_OK")
</pallas_src>

<mosaic_0001>
module attributes {stable_mosaic.version = 11 : i64} {
  func.func @_qkv_proj_kernel(%arg0: i32, %arg1: i32, %arg2: memref<1x8x32xf32, #tpu.memory_space<vmem>>, %arg3: memref<32x96xf32, #tpu.memory_space<vmem>>, %arg4: memref<1x96xf32, #tpu.memory_space<vmem>>, %arg5: memref<1x8x8x4xf32, #tpu.memory_space<vmem>>, %arg6: memref<1x8x8x4xf32, #tpu.memory_space<vmem>>, %arg7: memref<1x8x8x4xf32, #tpu.memory_space<vmem>>) attributes {dimension_semantics = [#tpu.dimension_semantics<parallel>, #tpu.dimension_semantics<parallel>], iteration_bounds = array<i64: 2, 1>, scalar_prefetch = 0 : i64, scratch_operands = 0 : i64, tpu.core_type = #tpu.core_type<tc>, window_params = [{transform_indices = @transform_0, window_bounds = array<i64: 1, 8, 32>}, {pipeline_mode = #tpu.pipeline_mode<synchronous>, transform_indices = @transform_1, window_bounds = array<i64: 32, 96>}, {pipeline_mode = #tpu.pipeline_mode<synchronous>, transform_indices = @transform_2, window_bounds = array<i64: 1, 96>}, {transform_indices = @transform_3, window_bounds = array<i64: 1, 8, 8, 4>}, {transform_indices = @transform_4, window_bounds = array<i64: 1, 8, 8, 4>}, {transform_indices = @transform_5, window_bounds = array<i64: 1, 8, 8, 4>}]} {
    %c0 = arith.constant 0 : index
    %c0_0 = arith.constant 0 : index
    %c0_1 = arith.constant 0 : index
    %0 = vector.load %arg2[%c0, %c0_0, %c0_1] : memref<1x8x32xf32, #tpu.memory_space<vmem>>, vector<1x8x32xf32>
    %1 = vector.shape_cast %0 : vector<1x8x32xf32> to vector<8x32xf32>
    %c0_2 = arith.constant 0 : index
    %c0_3 = arith.constant 0 : index
    %2 = vector.load %arg3[%c0_2, %c0_3] : memref<32x96xf32, #tpu.memory_space<vmem>>, vector<32x96xf32>
    %cst = arith.constant dense<0.000000e+00> : vector<8x96xf32>
    %3 = tpu.matmul %1, %2, %cst {dimension_numbers = #tpu.dot_dimension_numbers<[1], [0], [0], [1], [0, 0, 1, 1], [], []>} : vector<8x32xf32>, vector<32x96xf32>, vector<8x96xf32> -> vector<8x96xf32>
    %c0_4 = arith.constant 0 : index
    %c0_5 = arith.constant 0 : index
    %4 = vector.load %arg4[%c0_4, %c0_5] : memref<1x96xf32, #tpu.memory_space<vmem>>, vector<1x96xf32>
    %5 = vector.shape_cast %4 : vector<1x96xf32> to vector<96xf32>
    %6 = vector.shape_cast %5 : vector<96xf32> to vector<1x96xf32>
    %7 = vector.broadcast %6 : vector<1x96xf32> to vector<8x96xf32>
    %8 = arith.addf %3, %7 : vector<8x96xf32>
    %9 = vector.extract_strided_slice %8 {offsets = [0, 0], sizes = [8, 32], strides = [1, 1]} : vector<8x96xf32> to vector<8x32xf32>
    %10 = vector.shape_cast %9 : vector<8x32xf32> to vector<8x8x4xf32>
    %11 = tpu.transpose %10, [1, 0, 2] : vector<8x8x4xf32> -> vector<8x8x4xf32>
    %c0_6 = arith.constant 0 : index
    %c0_7 = arith.constant 0 : index
    %c0_8 = arith.constant 0 : index
    %c0_9 = arith.constant 0 : index
    %12 = vector.load %arg5[%c0_6, %c0_7, %c0_8, %c0_9] : memref<1x8x8x4xf32, #tpu.memory_space<vmem>>, vector<1x8x8x4xf32>
    %13 = vector.shape_cast %12 : vector<1x8x8x4xf32> to vector<8x8x4xf32>
    %14 = vector.shape_cast %11 : vector<8x8x4xf32> to vector<1x8x8x4xf32>
    tpu.vector_store %arg5[%c0_6, %c0_7, %c0_8, %c0_9], %14 {strides = array<i32>} : memref<1x8x8x4xf32, #tpu.memory_space<vmem>>, vector<1x8x8x4xf32>,
    %15 = vector.extract_strided_slice %8 {offsets = [0, 32], sizes = [8, 32], strides = [1, 1]} : vector<8x96xf32> to vector<8x32xf32>
    %16 = vector.shape_cast %15 : vector<8x32xf32> to vector<8x8x4xf32>
    %17 = tpu.transpose %16, [1, 0, 2] : vector<8x8x4xf32> -> vector<8x8x4xf32>
    %c0_10 = arith.constant 0 : index
    %c0_11 = arith.constant 0 : index
    %c0_12 = arith.constant 0 : index
    %c0_13 = arith.constant 0 : index
    %18 = vector.load %arg6[%c0_10, %c0_11, %c0_12, %c0_13] : memref<1x8x8x4xf32, #tpu.memory_space<vmem>>, vector<1x8x8x4xf32>
    %19 = vector.shape_cast %18 : vector<1x8x8x4xf32> to vector<8x8x4xf32>
    %20 = vector.shape_cast %17 : vector<8x8x4xf32> to vector<1x8x8x4xf32>
    tpu.vector_store %arg6[%c0_10, %c0_11, %c0_12, %c0_13], %20 {strides = array<i32>} : memref<1x8x8x4xf32, #tpu.memory_space<vmem>>, vector<1x8x8x4xf32>,
    %21 = vector.extract_strided_slice %8 {offsets = [0, 64], sizes = [8, 32], strides = [1, 1]} : vector<8x96xf32> to vector<8x32xf32>
    %22 = vector.shape_cast %21 : vector<8x32xf32> to vector<8x8x4xf32>
    %23 = tpu.transpose %22, [1, 0, 2] : vector<8x8x4xf32> -> vector<8x8x4xf32>
    %c0_14 = arith.constant 0 : index
    %c0_15 = arith.constant 0 : index
    %c0_16 = arith.constant 0 : index
    %c0_17 = arith.constant 0 : index
    %24 = vector.load %arg7[%c0_14, %c0_15, %c0_16, %c0_17] : memref<1x8x8x4xf32, #tpu.memory_space<vmem>>, vector<1x8x8x4xf32>
    %25 = vector.shape_cast %24 : vector<1x8x8x4xf32> to vector<8x8x4xf32>
    %26 = vector.shape_cast %23 : vector<8x8x4xf32> to vector<1x8x8x4xf32>
    tpu.vector_store %arg7[%c0_14, %c0_15, %c0_16, %c0_17], %26 {strides = array<i32>} : memref<1x8x8x4xf32, #tpu.memory_space<vmem>>, vector<1x8x8x4xf32>,
    return
  }
  func.func @transform_0(%arg0: i32, %arg1: i32) -> (i32, i32, i32) {
    %c0_i32 = arith.constant 0 : i32
    %c0_i32_0 = arith.constant 0 : i32
    return %arg0, %arg1, %c0_i32 : i32, i32, i32
  }
  func.func @transform_1(%arg0: i32, %arg1: i32) -> (i32, i32) {
    %c0_i32 = arith.constant 0 : i32
    %c0_i32_0 = arith.constant 0 : i32
    %c0_i32_1 = arith.constant 0 : i32
    return %c0_i32, %c0_i32_0 : i32, i32
  }
  func.func @transform_2(%arg0: i32, %arg1: i32) -> (i32, i32) {
    %c0_i32 = arith.constant 0 : i32
    %c0_i32_0 = arith.constant 0 : i32
    %c0_i32_1 = arith.constant 0 : i32
    return %c0_i32, %c0_i32_0 : i32, i32
  }
  func.func @transform_3(%arg0: i32, %arg1: i32) -> (i32, i32, i32, i32) {
    %c0_i32 = arith.constant 0 : i32
    %c0_i32_0 = arith.constant 0 : i32
    %c0_i32_1 = arith.constant 0 : i32
    return %arg0, %c0_i32, %arg1, %c0_i32_0 : i32, i32, i32, i32
  }
  func.func @transform_4(%arg0: i32, %arg1: i32) -> (i32, i32, i32, i32) {
    %c0_i32 = arith.constant 0 : i32
    %c0_i32_0 = arith.constant 0 : i32
    %c0_i32_1 = arith.constant 0 : i32
    return %arg0, %c0_i32, %arg1, %c0_i32_0 : i32, i32, i32, i32
  }
  func.func @transform_5(%arg0: i32, %arg1: i32) -> (i32, i32, i32, i32) {
    %c0_i32 = arith.constant 0 : i32
    %c0_i32_0 = arith.constant 0 : i32
    %c0_i32_1 = arith.constant 0 : i32
    return %arg0, %c0_i32, %arg1, %c0_i32_0 : i32, i32, i32, i32
  }
}

module attributes {stable_mosaic.version = 11 : i64} {
  func.func @_qkv_proj_kernel(%arg0: i32, %arg1: i32, %arg2: memref<1x8x32xf32, #tpu.memory_space<vmem>>, %arg3: memref<32x96xf32, #tpu.memory_space<vmem>>, %arg4: memref<1x96xf32, #tpu.memory_space<vmem>>, %arg5: memref<1x8x8x4xf32, #tpu.memory_space<vmem>>, %arg6: memref<1x8x8x4xf32, #tpu.memory_space<vmem>>, %arg7: memref<1x8x8x4xf32, #tpu.memory_space<vmem>>) attributes {dimension_semantics = [#tpu.dimension_semantics<parallel>, #tpu.dimension_semantics<parallel>], iteration_bounds = array<i64: 2, 1>, scalar_prefetch = 0 : i64, scratch_operands = 0 : i64, tpu.core_type = #tpu.core_type<tc>, window_params = [{transform_indices = @transform_0, window_bounds = array<i64: 1, 8, 32>}, {pipeline_mode = #tpu.pipeline_mode<synchronous>, transform_indices = @transform_1, window_bounds = array<i64: 32, 96>}, {pipeline_mode = #tpu.pipeline_mode<synchronous>, transform_indices = @transform_2, window_bounds = array<i64: 1, 96>}, {transform_indices = @transform_3, window_bounds = array<i64: 1, 8, 8, 4>}, {transform_indices = @transform_4, window_bounds = array<i64: 1, 8, 8, 4>}, {transform_indices = @transform_5, window_bounds = array<i64: 1, 8, 8, 4>}]} {
    %c0 = arith.constant 0 : index
    %c0_0 = arith.constant 0 : index
    %c0_1 = arith.constant 0 : index
    %0 = vector.load %arg2[%c0, %c0_0, %c0_1] : memref<1x8x32xf32, #tpu.memory_space<vmem>>, vector<1x8x32xf32>
    %1 = vector.shape_cast %0 : vector<1x8x32xf32> to vector<8x32xf32>
    %c0_2 = arith.constant 0 : index
    %c0_3 = arith.constant 0 : index
    %2 = vector.load %arg3[%c0_2, %c0_3] : memref<32x96xf32, #tpu.memory_space<vmem>>, vector<32x96xf32>
    %cst = arith.constant dense<0.000000e+00> : vector<8x96xf32>
    %3 = tpu.matmul %1, %2, %cst {dimension_numbers = #tpu.dot_dimension_numbers<[1], [0], [0], [1], [0, 0, 1, 1], [], []>} : vector<8x32xf32>, vector<32x96xf32>, vector<8x96xf32> -> vector<8x96xf32>
    %c0_4 = arith.constant 0 : index
    %c0_5 = arith.constant 0 : index
    %4 = vector.load %arg4[%c0_4, %c0_5] : memref<1x96xf32, #tpu.memory_space<vmem>>, vector<1x96xf32>
    %5 = vector.shape_cast %4 : vector<1x96xf32> to vector<96xf32>
    %6 = vector.shape_cast %5 : vector<96xf32> to vector<1x96xf32>
    %7 = vector.broadcast %6 : vector<1x96xf32> to vector<8x96xf32>
    %8 = arith.addf %3, %7 : vector<8x96xf32>
    %9 = vector.extract_strided_slice %8 {offsets = [0, 0], sizes = [8, 32], strides = [1, 1]} : vector<8x96xf32> to vector<8x32xf32>
    %10 = vector.shape_cast %9 : vector<8x32xf32> to vector<8x8x4xf32>
    %11 = tpu.transpose %10, [1, 0, 2] : vector<8x8x4xf32> -> vector<8x8x4xf32>
    %c0_6 = arith.constant 0 : index
    %c0_7 = arith.constant 0 : index
    %c0_8 = arith.constant 0 : index
    %c0_9 = arith.constant 0 : index
    %12 = vector.load %arg5[%c0_6, %c0_7, %c0_8, %c0_9] : memref<1x8x8x4xf32, #tpu.memory_space<vmem>>, vector<1x8x8x4xf32>
    %13 = vector.shape_cast %12 : vector<1x8x8x4xf32> to vector<8x8x4xf32>
    %14 = vector.shape_cast %11 : vector<8x8x4xf32> to vector<1x8x8x4xf32>
    tpu.vector_store %arg5[%c0_6, %c0_7, %c0_8, %c0_9], %14 {strides = array<i32>} : memref<1x8x8x4xf32, #tpu.memory_space<vmem>>, vector<1x8x8x4xf32>,
    %15 = vector.extract_strided_slice %8 {offsets = [0, 32], sizes = [8, 32], strides = [1, 1]} : vector<8x96xf32> to vector<8x32xf32>
    %16 = vector.shape_cast %15 : vector<8x32xf32> to vector<8x8x4xf32>
    %17 = tpu.transpose %16, [1, 0, 2] : vector<8x8x4xf32> -> vector<8x8x4xf32>
    %c0_10 = arith.constant 0 : index
    %c0_11 = arith.constant 0 : index
    %c0_12 = arith.constant 0 : index
    %c0_13 = arith.constant 0 : index
    %18 = vector.load %arg6[%c0_10, %c0_11, %c0_12, %c0_13] : memref<1x8x8x4xf32, #tpu.memory_space<vmem>>, vector<1x8x8x4xf32>
    %19 = vector.shape_cast %18 : vector<1x8x8x4xf32> to vector<8x8x4xf32>
    %20 = vector.shape_cast %17 : vector<8x8x4xf32> to vector<1x8x8x4xf32>
    tpu.vector_store %arg6[%c0_10, %c0_11, %c0_12, %c0_13], %20 {strides = array<i32>} : memref<1x8x8x4xf32, #tpu.memory_space<vmem>>, vector<1x8x8x4xf32>,
    %21 = vector.extract_strided_slice %8 {offsets = [0, 64], sizes = [8, 32], strides = [1, 1]} : vector<8x96xf32> to vector<8x32xf32>
    %22 = vector.shape_cast %21 : vector<8x32xf32> to vector<8x8x4xf32>
    %23 = tpu.transpose %22, [1, 0, 2] : vector<8x8x4xf32> -> vector<8x8x4xf32>
    %c0_14 = arith.constant 0 : index
    %c0_15 = arith.constant 0 : index
    %c0_16 = arith.constant 0 : index
    %c0_17 = arith.constant 0 : index
    %24 = vector.load %arg7[%c0_14, %c0_15, %c0_16, %c0_17] : memref<1x8x8x4xf32, #tpu.memory_space<vmem>>, vector<1x8x8x4xf32>
    %25 = vector.shape_cast %24 : vector<1x8x8x4xf32> to vector<8x8x4xf32>
    %26 = vector.shape_cast %23 : vector<8x8x4xf32> to vector<1x8x8x4xf32>
    tpu.vector_store %arg7[%c0_14, %c0_15, %c0_16, %c0_17], %26 {strides = array<i32>} : memref<1x8x8x4xf32, #tpu.memory_space<vmem>>, vector<1x8x8x4xf32>,
    return
  }
  func.func @transform_0(%arg0: i32, %arg1: i32) -> (i32, i32, i32) {
    %c0_i32 = arith.constant 0 : i32
    %c0_i32_0 = arith.constant 0 : i32
    return %arg0, %arg1, %c0_i32 : i32, i32, i32
  }
  func.func @transform_1(%arg0: i32, %arg1: i32) -> (i32, i32) {
    %c0_i32 = arith.constant 0 : i32
    %c0_i32_0 = arith.constant 0 : i32
    %c0_i32_1 = arith.constant 0 : i32
    return %c0_i32, %c0_i32_0 : i32, i32
  }
  func.func @transform_2(%arg0: i32, %arg1: i32) -> (i32, i32) {
    %c0_i32 = arith.constant 0 : i32
    %c0_i32_0 = arith.constant 0 : i32
    %c0_i32_1 = arith.constant 0 : i32
    return %c0_i32, %c0_i32_0 : i32, i32
  }
  func.func @transform_3(%arg0: i32, %arg1: i32) -> (i32, i32, i32, i32) {
    %c0_i32 = arith.constant 0 : i32
    %c0_i32_0 = arith.constant 0 : i32
    %c0_i32_1 = arith.constant 0 : i32
    return %arg0, %c0_i32, %arg1, %c0_i32_0 : i32, i32, i32, i32
  }
  func.func @transform_4(%arg0: i32, %arg1: i32) -> (i32, i32, i32, i32) {
    %c0_i32 = arith.constant 0 : i32
    %c0_i32_0 = arith.constant 0 : i32
    %c0_i32_1 = arith.constant 0 : i32
    return %arg0, %c0_i32, %arg1, %c0_i32_0 : i32, i32, i32, i32
  }
  func.func @transform_5(%arg0: i32, %arg1: i32) -> (i32, i32, i32, i32) {
    %c0_i32 = arith.constant 0 : i32
    %c0_i32_0 = arith.constant 0 : i32
    %c0_i32_1 = arith.constant 0 : i32
    return %arg0, %c0_i32, %arg1, %c0_i32_0 : i32, i32, i32, i32
  }
}

</mosaic_0001>

<llo_original>
// kernel: tpu_custom_call.1
$region0: #{tpu_custom_call.1}
  #allocation0 [shape = 'u32[]', space=smem, size = 0x4, offset = 0x4, fixed_abs, tag = 'smem constant byte address 0x4 - core index']
  #allocation1 [shape = 'u32[72,128]{1,0:T(1,128)}', space=vmem, size = 0x9000, scoped, tag = 'internal scratch']
  %s0 = inlined_call_operand.hbm [shape: f32[2,8,32], index: 0, kind: input, shape index: {}]
  %s1 = inlined_call_operand.hbm [shape: f32[32,96], index: 1, kind: input, shape index: {}]
  %s2 = inlined_call_operand.vmem [shape: f32[1,96], index: 2, kind: input, shape index: {}]
  %s3 = inlined_call_operand.vmem [shape: f32[2,8,8,4], index: 3, kind: output, shape index: {0}]
  %s4 = inlined_call_operand.vmem [shape: f32[2,8,8,4], index: 4, kind: output, shape index: {1}]
  %s5 = inlined_call_operand.vmem [shape: f32[2,8,8,4], index: 5, kind: output, shape index: {2}]
  %6 = xla_tuple %s3, %s4, %s5
  %s7 = sld [smem:[#allocation0]]
  $region69: #{tpu_custom_call.1} parent=0
    _
  %s9 = ssub.s32 1, %s7
  %s10 = scalar_select 0, %s9, %s7
  $region1: #{tpu_custom_call.1} parent=0
    #allocation2 [shape = 'u8[8192]{0}', space=vmem, size = 0x2000, scoped, tag = 'input window, operand 0']
    #allocation3 [shape = 's32[2]{0}', space=sflag, size = 0x8, scoped, tag = 'scoped memory for tpu_custom_call.1']
    #allocation4 [shape = 'u8[16384]{0}', space=vmem, size = 0x4000, scoped, tag = 'input window, operand 1, single buffered']
    #allocation5 [shape = 's32[1]{0}', space=sflag, size = 0x4, scoped, tag = 'scoped memory for tpu_custom_call.1']
    %11 = vsyncpa [#allocation3], 0
    %s12 = scalar_lea.sflag [#allocation3], 1
    %13 = vsyncpa %s12, 0
    %14 = vsyncpa [#allocation5], 0
    loop: start=0, step=1, limit=4
    $region2: #{tpu_custom_call.1} parent=1 // loop_pre_header
      _
    $region3: #{tpu_custom_call.1} parent=1 // loop_header
      %s16 = sphi 0, %s20
      %p17 = scmp.ge.s32.totalorder %s16, 4
      %s23 = sphi 0, %s35
      %s24 = sphi 0, %s31
      %s25 = sphi 0, %s23
      %s26 = sphi 0, %s24
      %s27 = sphi 0, %s25
      %s28 = sphi 0, %s26
      %s40 = sphi 0, %s42
      %s43 = sphi 0, %s40
      %s44 = sphi 0, %s43
      %s60 = sphi 0, %s44
      %s64 = sphi 0, %s64
      %s66 = sphi 0, %s64
      %s67 = sphi 0, %s66
      %s81 = sphi 0, %s67
      %s85 = sphi 0, %s85
      %s87 = sphi 0, %s85
      %s88 = sphi 0, %s87
      %s102 = sphi 0, %s88
      %s110 = sphi 0, %s112
      %s113 = sphi 0, %s110
      %s114 = sphi 0, %s113
      %s130 = sphi 0, %s114
      %s138 = sphi 0, %s140
      %s141 = sphi 0, %s138
      %s142 = sphi 0, %s141
      %s158 = sphi 0, %s142
      %s166 = sphi 0, %s168
      %s169 = sphi 0, %s166
      %s170 = sphi 0, %s169
      %s186 = sphi 0, %s170
    $region4: #{tpu_custom_call.1} parent=1 // loop_header_branch
      %19 = sbr.rel (%p17) target = $region8
    $region5: #{tpu_custom_call.1} parent=1 // loop_body
      %s21 = ssub.s32 %s16, 1
      %s22 = ssub.s32 %s16, 2
      %s29 = sadd.s32 1, %s24
      %p30 = scmp.ge.s32.totalorder %s29, 1
      %s31 = scalar_select %p30, 0, %s29
      %s32 = sadd.s32 1, %s23
      %s33 = scalar_select %p30, %s32, %s23
      %p34 = scmp.ge.s32.totalorder %s33, 2
      %s35 = scalar_select %p34, 0, %s33
      %s36 = ssub.s32 %s23, %s35
      %s37 = ssub.s32 %s24, %s31
      %s38 = sor.u32 %s36, %s37
      %p39 = scmp.eq.s32.totalorder %s38, 0
      %s41 = sadd.s32 %s40, 1
      %s42 = scalar_select %p39, %s40, %s41
      %p45 = pneg %p39
      %p46 = scmp.eq.s32.totalorder %s16, 1
      %p47 = por %p45, %p46
      %p48 = scmp.ne.s32.totalorder %s40, %s43
      %p49 = scmp.eq.s32.totalorder %s16, 0
      %p50 = por %p48, %p49
      %p51 = scmp.ne.s32.totalorder %s40, %s43
      %p52 = scmp.eq.s32.totalorder %s21, 1
      %p53 = por %p51, %p52
      %p54 = scmp.ne.s32.totalorder %s43, %s44
      %p55 = scmp.eq.s32.totalorder %s21, 0
      %p56 = por %p54, %p55
      %p57 = scmp.ne.s32.totalorder %s43, %s44
      %p58 = scmp.eq.s32.totalorder %s22, 1
      %p59 = por %p57, %p58
      %p61 = scmp.ne.s32.totalorder %s44, %s60
      %p62 = scmp.eq.s32.totalorder %s22, 0
      %p63 = por %p61, %p62
      %s65 = sadd.s32 %s64, 1
      %p68 = scmp.eq.s32.totalorder %s16, 1
      %p69 = scmp.ne.s32.totalorder %s64, %s66
      %p70 = scmp.eq.s32.totalorder %s16, 0
      %p71 = por %p69, %p70
      %p72 = scmp.ne.s32.totalorder %s64, %s66
      %p73 = scmp.eq.s32.totalorder %s21, 1
      %p74 = por %p72, %p73
      %p75 = scmp.ne.s32.totalorder %s66, %s67
      %p76 = scmp.eq.s32.totalorder %s21, 0
      %p77 = por %p75, %p76
      %p78 = scmp.ne.s32.totalorder %s66, %s67
      %p79 = scmp.eq.s32.totalorder %s22, 1
      %p80 = por %p78, %p79
      %p82 = scmp.ne.s32.totalorder %s67, %s81
      %p83 = scmp.eq.s32.totalorder %s22, 0
      %p84 = por %p82, %p83
      %s86 = sadd.s32 %s85, 1
      %p89 = scmp.eq.s32.totalorder %s16, 1
      %p90 = scmp.ne.s32.totalorder %s85, %s87
      %p91 = scmp.eq.s32.totalorder %s16, 0
      %p92 = por %p90, %p91
      %p93 = scmp.ne.s32.totalorder %s85, %s87
      %p94 = scmp.eq.s32.totalorder %s21, 1
      %p95 = por %p93, %p94
      %p96 = scmp.ne.s32.totalorder %s87, %s88
      %p97 = scmp.eq.s32.totalorder %s21, 0
      %p98 = por %p96, %p97
      %p99 = scmp.ne.s32.totalorder %s87, %s88
      %p100 = scmp.eq.s32.totalorder %s22, 1
      %p101 = por %p99, %p100
      %p103 = scmp.ne.s32.totalorder %s88, %s102
      %p104 = scmp.eq.s32.totalorder %s22, 0
      %p105 = por %p103, %p104
      %s106 = ssub.s32 %s23, %s35
      %s107 = ssub.s32 %s24, %s31
      %s108 = sor.u32 %s106, %s107
      %p109 = scmp.eq.s32.totalorder %s108, 0
      %s111 = sadd.s32 %s110, 1
      %s112 = scalar_select %p109, %s110, %s111
      %p115 = pneg %p109
      %p116 = scmp.eq.s32.totalorder %s16, 1
      %p117 = por %p115, %p116
      %p118 = scmp.ne.s32.totalorder %s110, %s113
      %p119 = scmp.eq.s32.totalorder %s16, 0
      %p120 = por %p118, %p119
      %p121 = scmp.ne.s32.totalorder %s110, %s113
      %p122 = scmp.eq.s32.totalorder %s21, 1
      %p123 = por %p121, %p122
      %p124 = scmp.ne.s32.totalorder %s113, %s114
      %p125 = scmp.eq.s32.totalorder %s21, 0
      %p126 = por %p124, %p125
      %p127 = scmp.ne.s32.totalorder %s113, %s114
      %p128 = scmp.eq.s32.totalorder %s22, 1
      %p129 = por %p127, %p128
      %p131 = scmp.ne.s32.totalorder %s114, %s130
      %p132 = scmp.eq.s32.totalorder %s22, 0
      %p133 = por %p131, %p132
      %s134 = ssub.s32 %s23, %s35
      %s135 = ssub.s32 %s24, %s31
      %s136 = sor.u32 %s134, %s135
      %p137 = scmp.eq.s32.totalorder %s136, 0
      %s139 = sadd.s32 %s138, 1
      %s140 = scalar_select %p137, %s138, %s139
      %p143 = pneg %p137
      %p144 = scmp.eq.s32.totalorder %s16, 1
      %p145 = por %p143, %p144
      %p146 = scmp.ne.s32.totalorder %s138, %s141
      %p147 = scmp.eq.s32.totalorder %s16, 0
      %p148 = por %p146, %p147
      %p149 = scmp.ne.s32.totalorder %s138, %s141
      %p150 = scmp.eq.s32.totalorder %s21, 1
      %p151 = por %p149, %p150
      %p152 = scmp.ne.s32.totalorder %s141, %s142
      %p153 = scmp.eq.s32.totalorder %s21, 0
      %p154 = por %p152, %p153
      %p155 = scmp.ne.s32.totalorder %s141, %s142
      %p156 = scmp.eq.s32.totalorder %s22, 1
      %p157 = por %p155, %p156
      %p159 = scmp.ne.s32.totalorder %s142, %s158
      %p160 = scmp.eq.s32.totalorder %s22, 0
      %p161 = por %p159, %p160
      %s162 = ssub.s32 %s23, %s35
      %s163 = ssub.s32 %s24, %s31
      %s164 = sor.u32 %s162, %s163
      %p165 = scmp.eq.s32.totalorder %s164, 0
      %s167 = sadd.s32 %s166, 1
      %s168 = scalar_select %p165, %s166, %s167
      %p171 = pneg %p165
      %p172 = scmp.eq.s32.totalorder %s16, 1
      %p173 = por %p171, %p172
      %p174 = scmp.ne.s32.totalorder %s166, %s169
      %p175 = scmp.eq.s32.totalorder %s16, 0
      %p176 = por %p174, %p175
      %p177 = scmp.ne.s32.totalorder %s166, %s169
      %p178 = scmp.eq.s32.totalorder %s21, 1
      %p179 = por %p177, %p178
      %p180 = scmp.ne.s32.totalorder %s169, %s170
      %p181 = scmp.eq.s32.totalorder %s21, 0
      %p182 = por %p180, %p181
      %p183 = scmp.ne.s32.totalorder %s169, %s170
      %p184 = scmp.eq.s32.totalorder %s22, 1
      %p185 = por %p183, %p184
      %p187 = scmp.ne.s32.totalorder %s170, %s186
      %p188 = scmp.eq.s32.totalorder %s22, 0
      %p189 = por %p187, %p188
      %p190 = scmp.le.s32.totalorder 1, %s16
      %p191 = scmp.lt.s32.totalorder %s16, 3
      %p192 = pnand %p190, %p191
      %p193 = pneg %p192
      // Predicated region
      $region9: #{tpu_custom_call.1} parent=5 // pred_check
        _
      $region10: #{tpu_custom_call.1} parent=5 // pred_check_branch
        %195 = sbr.rel (%p192) target = $region12
      $region11: #{tpu_custom_call.1} parent=5 // pred_region
        %s196 = ssub.s32 %s16, 1
        // Predicated region
        $region13: #{tpu_custom_call.1} parent=11 // pred_check
          %p197 = pneg %p77
        $region14: #{tpu_custom_call.1} parent=11 // pred_check_branch
          %199 = sbr.rel (%p197) target = $region16
        $region15: #{tpu_custom_call.1} parent=11 // pred_region
          %201 = vsyncadd [#allocation5], 0
          %s202 = sshll.u32 %s1, 4
          %s203 = int_to_ptr.hbm [resolvable:$true] %s202
          %s204 = sshll.u32 [#allocation4], 4
          %s205 = int_to_ptr.vmem [resolvable:$true] %s204
          %210 = dma.hbm_to_vmem [thread:$0]  %s203, 512, %s205, [#allocation5], 128, 128, 8
        $region16: #{tpu_custom_call.1} parent=11 // pred_fallthru
          _
        // Predicated region
        $region17: #{tpu_custom_call.1} parent=11 // pred_check
          %p211 = pneg %p98
        $region18: #{tpu_custom_call.1} parent=11 // pred_check_branch
          %213 = sbr.rel (%p211) target = $region20
        $region19: #{tpu_custom_call.1} parent=11 // pred_region
          _
        $region20: #{tpu_custom_call.1} parent=11 // pred_fallthru
          _
      $region12: #{tpu_custom_call.1} parent=5 // pred_fallthru
        _
      %p214 = scmp.lt.s32.totalorder %s16, 2
      // Predicated region
      $region21: #{tpu_custom_call.1} parent=5 // pred_check
        %p215 = pneg %p214
      $region22: #{tpu_custom_call.1} parent=5 // pred_check_branch
        %217 = sbr.rel (%p215) target = $region24
      $region23: #{tpu_custom_call.1} parent=5 // pred_region
        // Predicated region
        $region25: #{tpu_custom_call.1} parent=23 // pred_check
          %p218 = pneg %p50
        $region26: #{tpu_custom_call.1} parent=23 // pred_check_branch
          %220 = sbr.rel (%p218) target = $region28
        $region27: #{tpu_custom_call.1} parent=23 // pred_region
          %s221 = sand.u32 %s40, 1
          %s222 = scalar_lea.sflag [#allocation3], %s221
          %s223 = sand.u32 %s40, 1
          %s224 = smul.addr %s223, 8
          %s225 = scalar_lea.vmem [#allocation2], %s224
          %227 = vsyncadd %s222, 0
          %s228 = sadd.s32 %s24, %s23
          %s229 = smul.addr %s228, 8
          %s230 = scalar_lea.hbm %s0, %s229
          %s232 = sshll.u32 %s230, 4
          %s233 = int_to_ptr.hbm [resolvable:$true] %s232
          %s234 = sshll.u32 %s225, 4
          %s235 = int_to_ptr.vmem [resolvable:$true] %s234
          %237 = dma.hbm_to_vmem [thread:$0]  %s233, 128, %s235, %s222
        $region28: #{tpu_custom_call.1} parent=23 // pred_fallthru
          _
      $region24: #{tpu_custom_call.1} parent=5 // pred_fallthru
        _
      %p238 = scmp.le.s32.totalorder 1, %s16
      %p239 = scmp.lt.s32.totalorder %s16, 3
      %p240 = pnand %p238, %p239
      %p241 = pneg %p240
      // Predicated region
      $region29: #{tpu_custom_call.1} parent=5 // pred_check
        _
      $region30: #{tpu_custom_call.1} parent=5 // pred_check_branch
        %243 = sbr.rel (%p240) target = $region32
      $region31: #{tpu_custom_call.1} parent=5 // pred_region
        %s244 = ssub.s32 %s16, 1
        %s245 = sand.u32 %s43, 1
        %s246 = scalar_lea.sflag [#allocation3], %s245
        %s247 = sand.u32 %s43, 1
        %s248 = smul.addr %s247, 8
        %s249 = scalar_lea.vmem [#allocation2], %s248
        // Predicated region
        $region33: #{tpu_custom_call.1} parent=31 // pred_check
          %p250 = pneg %p56
        $region34: #{tpu_custom_call.1} parent=31 // pred_check_branch
          %252 = sbr.rel (%p250) target = $region36
        $region35: #{tpu_custom_call.1} parent=31 // pred_region
          %254 = dma.done %s246, 128
        $region36: #{tpu_custom_call.1} parent=31 // pred_fallthru
          _
        // Predicated region
        $region37: #{tpu_custom_call.1} parent=31 // pred_check
          %p255 = pneg %p77
        $region38: #{tpu_custom_call.1} parent=31 // pred_check_branch
          %257 = sbr.rel (%p255) target = $region40
        $region39: #{tpu_custom_call.1} parent=31 // pred_region
          %259 = dma.done [#allocation5], 512
        $region40: #{tpu_custom_call.1} parent=31 // pred_fallthru
          _
        %s260 = sand.u32 %s43, 1
        %s261 = scalar_lea.sflag [#allocation3], %s260
        %s262 = sand.u32 %s43, 1
        %s263 = smul.addr %s262, 8
        %s264 = scalar_lea.vmem [#allocation2], %s263
        %p265 = pneg %p56
        %p266 = pneg %p53
        %p267 = pneg %p77
        %p268 = pneg %p74
        %p269 = pneg %p98
        %p270 = pneg %p95
        %p271 = pneg %p126
        %p272 = pneg %p123
        %p273 = scmp.lt.s32.totalorder %s25, 1
        %s274 = scalar_select %p273, %s25, 1
        %p275 = scmp.lt.s32.totalorder %s26, 0
        %s276 = scalar_select %p275, %s26, 0
        %s277 = smul.addr %s274, 8
        %s278 = sadd.s32 %s276, %s277
        %s279 = smul.addr %s278, 8
        %s280 = scalar_lea.vmem %s3, %s279
        %p281 = pneg %p154
        %p282 = pneg %p151
        %p283 = scmp.lt.s32.totalorder %s25, 1
        %s284 = scalar_select %p283, %s25, 1
        %p285 = scmp.lt.s32.totalorder %s26, 0
        %s286 = scalar_select %p285, %s26, 0
        %s287 = smul.addr %s284, 8
        %s288 = sadd.s32 %s286, %s287
        %s289 = smul.addr %s288, 8
        %s290 = scalar_lea.vmem %s4, %s289
        %p291 = pneg %p182
        %p292 = pneg %p179
        %p293 = scmp.lt.s32.totalorder %s25, 1
        %s294 = scalar_select %p293, %s25, 1
        %p295 = scmp.lt.s32.totalorder %s26, 0
        %s296 = scalar_select %p295, %s26, 0
        %s297 = smul.addr %s294, 8
        %s298 = sadd.s32 %s296, %s297
        %s299 = smul.addr %s298, 8
        %s300 = scalar_lea.vmem %s5, %s299
        %p301 = scmp.lt.s32.totalorder %s25, 1
        %s302 = scalar_select %p301, %s25, 1
        %p303 = scmp.lt.s32.totalorder %s26, 0
        %s304 = scalar_select %p303, %s26, 0
        %s305 = smul.addr %s302, 8
        %s306 = sadd.s32 %s304, %s305
        %s307 = smul.addr %s306, 8
        %s308 = scalar_lea.vmem %s3, %s307
        %p309 = scmp.lt.s32.totalorder %s25, 1
        %s310 = scalar_select %p309, %s25, 1
        %p311 = scmp.lt.s32.totalorder %s26, 0
        %s312 = scalar_select %p311, %s26, 0
        %s313 = smul.addr %s310, 8
        %s314 = sadd.s32 %s312, %s313
        %s315 = smul.addr %s314, 8
        %s316 = scalar_lea.vmem %s4, %s315
        %p317 = scmp.lt.s32.totalorder %s25, 1
        %s318 = scalar_select %p317, %s25, 1
        %p319 = scmp.lt.s32.totalorder %s26, 0
        %s320 = scalar_select %p319, %s26, 0
        %s321 = smul.addr %s318, 8
        %s322 = sadd.s32 %s320, %s321
        %s323 = smul.addr %s322, 8
        %s324 = scalar_lea.vmem %s5, %s323
        %v325 = vld [vmem:[%s249] sm:$0xff]
        %v326 = vld [vmem:[#allocation4] sm:$0xff]
        %v327 = vld [vmem:[#allocation4 + $0x8] sm:$0xff]
        %v328 = vld [vmem:[#allocation4 + $0x10] sm:$0xff]
        %v329 = vld [vmem:[#allocation4 + $0x18] sm:$0xff]
        %v330 = vld [vmem:[%s2] sm:$0x1]
        %v332 = vperm.slane %v330, 0
        %vm334 = vcmask 261120
        %v336 = vsel %vm334, %v325, 0
        %338 = vmatpush.msra.mxu0 0.0
        %339 = vmatpush.msra.mxu0 0.0
        %340 = vmatpush.msra.mxu0 0.0
        %341 = vmatpush.msra.mxu0 0.0
        %342 = vmatpush.msra.mxu0 0.0
        %343 = vmatpush.msra.mxu0 0.0
        %344 = vmatpush.msra.mxu0 0.0
        %345 = vmatpush.msra.mxu0 0.0
        %346 = vmatpush.msra.mxu0 0.0
        %347 = vmatpush.msra.mxu0 0.0
        %348 = vmatpush.msra.mxu0 0.0
        %349 = vmatpush.msra.mxu0 0.0
        %350 = vmatpush.msra.mxu0 %v329
        %351 = vmatpush.msra.mxu0 %v328
        %352 = vmatpush.msra.mxu0 %v327
        %353 = vmatpush.msra.mxu0 %v326
        %354 = vmatmul.f32.gmra.mxu0 %v336
        %v355 = vpop.f32.mrf.mxu0
        %v356 = vadd.f32 %v332, %v355
        %357 = vdwg.mxu0
        %359 = vrot.lane.b32.xlu0 %v356, 124
        %v360 = vpop.permute.xlu0 %359
        %362 = vrot.lane.b32.xlu0 %v356, 120
        %v363 = vpop.permute.xlu0 %362
        %365 = vrot.lane.b32.xlu0 %v356, 116
        %v366 = vpop.permute.xlu0 %365
        %368 = vrot.lane.b32.xlu0 %v356, 112
        %v369 = vpop.permute.xlu0 %368
        %371 = vrot.lane.b32.xlu0 %v356, 108
        %v372 = vpop.permute.xlu0 %371
        %374 = vrot.lane.b32.xlu0 %v356, 104
        %v375 = vpop.permute.xlu0 %374
        %377 = vrot.lane.b32.xlu0 %v356, 100
        %v378 = vpop.permute.xlu0 %377
        %v380 = vrot.slane %v363, 4
        %vm381 = vcmask 1047556
        %v382 = vsel %vm381, %v380, %v356
        %v383 = vrot.slane %v356, 4
        %v384 = vsel %vm381, %v363, %v383
        %v386 = vunpack.c.l.s4 1983009808
        %v387 = vunpack.c.0.s8 %v386
        %v388 = vperm.slane %v382, %v387
        %v390 = vunpack.c.l.s4 1983009808
        %v391 = vunpack.c.0.s8 %v390
        %v392 = vperm.slane %v384, %v391
        %v393 = vrot.slane %v366, 4
        %v394 = vsel %vm381, %v393, %v360
        %v395 = vrot.slane %v360, 4
        %v396 = vsel %vm381, %v366, %v395
        %v398 = vunpack.c.l.s4 1983009808
        %v399 = vunpack.c.0.s8 %v398
        %v400 = vperm.slane %v394, %v399
        %v402 = vunpack.c.l.s4 1983009808
        %v403 = vunpack.c.0.s8 %v402
        %v404 = vperm.slane %v396, %v403
        %v405 = vrot.slane %v375, 4
        %v406 = vsel %vm381, %v405, %v369
        %v407 = vrot.slane %v369, 4
        %v408 = vsel %vm381, %v375, %v407
        %v410 = vunpack.c.l.s4 1983009808
        %v411 = vunpack.c.0.s8 %v410
        %v412 = vperm.slane %v406, %v411
        %v414 = vunpack.c.l.s4 1983009808
        %v415 = vunpack.c.0.s8 %v414
        %v416 = vperm.slane %v408, %v415
        %v417 = vrot.slane %v378, 4
        %v418 = vsel %vm381, %v417, %v372
        %v419 = vrot.slane %v372, 4
        %v420 = vsel %vm381, %v378, %v419
        %v422 = vunpack.c.l.s4 1983009808
        %v423 = vunpack.c.0.s8 %v422
        %v424 = vperm.slane %v418, %v423
        %v426 = vunpack.c.l.s4 1983009808
        %v427 = vunpack.c.0.s8 %v426
        %v428 = vperm.slane %v420, %v427
        %v429 = vrot.slane %v400, 4
        %v430 = vsel %vm381, %v429, %v388
        %v431 = vrot.slane %v388, 4
        %v432 = vsel %vm381, %v400, %v431
        %v434 = vunpack.c.l.s4 1934713408
        %v435 = vunpack.c.0.s8 %v434
        %v436 = vperm.slane %v430, %v435
        %v438 = vunpack.c.l.s4 1934713408
        %v439 = vunpack.c.0.s8 %v438
        %v440 = vperm.slane %v432, %v439
        %v441 = vrot.slane %v404, 4
        %v442 = vsel %vm381, %v441, %v392
        %v443 = vrot.slane %v392, 4
        %v444 = vsel %vm381, %v404, %v443
        %v446 = vunpack.c.l.s4 1934713408
        %v447 = vunpack.c.0.s8 %v446
        %v448 = vperm.slane %v442, %v447
        %v450 = vunpack.c.l.s4 1934713408
        %v451 = vunpack.c.0.s8 %v450
        %v452 = vperm.slane %v444, %v451
        %v453 = vrot.slane %v424, 4
        %v454 = vsel %vm381, %v453, %v412
        %v455 = vrot.slane %v412, 4
        %v456 = vsel %vm381, %v424, %v455
        %v458 = vunpack.c.l.s4 1934713408
        %v459 = vunpack.c.0.s8 %v458
        %v460 = vperm.slane %v454, %v459
        %v462 = vunpack.c.l.s4 1934713408
        %v463 = vunpack.c.0.s8 %v462
        %v464 = vperm.slane %v456, %v463
        %v465 = vrot.slane %v428, 4
        %v466 = vsel %vm381, %v465, %v416
        %v467 = vrot.slane %v416, 4
        %v468 = vsel %vm381, %v428, %v467
        %v470 = vunpack.c.l.s4 1934713408
        %v471 = vunpack.c.0.s8 %v470
        %v472 = vperm.slane %v466, %v471
        %v474 = vunpack.c.l.s4 1934713408
        %v475 = vunpack.c.0.s8 %v474
        %v476 = vperm.slane %v468, %v475
        %v477 = vrot.slane %v460, 4
        %v478 = vsel %vm381, %v477, %v436
        %v479 = vrot.slane %v436, 4
        %v480 = vsel %vm381, %v460, %v479
        %v481 = vrot.slane %v464, 4
        %v482 = vsel %vm381, %v481, %v440
        %v483 = vrot.slane %v440, 4
        %v484 = vsel %vm381, %v464, %v483
        %v485 = vrot.slane %v472, 4
        %v486 = vsel %vm381, %v485, %v448
        %v487 = vrot.slane %v448, 4
        %v488 = vsel %vm381, %v472, %v487
        %v489 = vrot.slane %v476, 4
        %v490 = vsel %vm381, %v489, %v452
        %v491 = vrot.slane %v452, 4
        %v492 = vsel %vm381, %v476, %v491
        %v493 = vrot.slane %v482, 4
        %v494 = vsel %vm381, %v493, %v478
        %v495 = vrot.slane %v478, 4
        %v496 = vsel %vm381, %v482, %v495
        %v498 = vunpack.c.l.s4 1983009808
        %v499 = vunpack.c.0.s8 %v498
        %v500 = vperm.slane %v494, %v499
        %v502 = vunpack.c.l.s4 1983009808
        %v503 = vunpack.c.0.s8 %v502
        %v504 = vperm.slane %v496, %v503
        %v505 = vrot.slane %v484, 4
        %v506 = vsel %vm381, %v505, %v480
        %v507 = vrot.slane %v480, 4
        %v508 = vsel %vm381, %v484, %v507
        %v510 = vunpack.c.l.s4 1983009808
        %v511 = vunpack.c.0.s8 %v510
        %v512 = vperm.slane %v506, %v511
        %v514 = vunpack.c.l.s4 1983009808
        %v515 = vunpack.c.0.s8 %v514
        %v516 = vperm.slane %v508, %v515
        %v517 = vrot.slane %v490, 4
        %v518 = vsel %vm381, %v517, %v486
        %v519 = vrot.slane %v486, 4
        %v520 = vsel %vm381, %v490, %v519
        %v522 = vunpack.c.l.s4 1983009808
        %v523 = vunpack.c.0.s8 %v522
        %v524 = vperm.slane %v518, %v523
        %v526 = vunpack.c.l.s4 1983009808
        %v527 = vunpack.c.0.s8 %v526
        %v528 = vperm.slane %v520, %v527
        %v529 = vrot.slane %v492, 4
        %v530 = vsel %vm381, %v529, %v488
        %v531 = vrot.slane %v488, 4
        %v532 = vsel %vm381, %v492, %v531
        %v534 = vunpack.c.l.s4 1983009808
        %v535 = vunpack.c.0.s8 %v534
        %v536 = vperm.slane %v530, %v535
        %v538 = vunpack.c.l.s4 1983009808
        %v539 = vunpack.c.0.s8 %v538
        %v540 = vperm.slane %v532, %v539
        %v541 = vrot.slane %v512, 4
        %v542 = vsel %vm381, %v541, %v500
        %v543 = vrot.slane %v500, 4
        %v544 = vsel %vm381, %v512, %v543
        %v546 = vunpack.c.l.s4 1934713408
        %v547 = vunpack.c.0.s8 %v546
        %v548 = vperm.slane %v542, %v547
        %v550 = vunpack.c.l.s4 1934713408
        %v551 = vunpack.c.0.s8 %v550
        %v552 = vperm.slane %v544, %v551
        %v553 = vrot.slane %v516, 4
        %v554 = vsel %vm381, %v553, %v504
        %v555 = vrot.slane %v504, 4
        %v556 = vsel %vm381, %v516, %v555
        %v558 = vunpack.c.l.s4 1934713408
        %v559 = vunpack.c.0.s8 %v558
        %v560 = vperm.slane %v554, %v559
        %v562 = vunpack.c.l.s4 1934713408
        %v563 = vunpack.c.0.s8 %v562
        %v564 = vperm.slane %v556, %v563
        %v565 = vrot.slane %v536, 4
        %v566 = vsel %vm381, %v565, %v524
        %v567 = vrot.slane %v524, 4
        %v568 = vsel %vm381, %v536, %v567
        %v570 = vunpack.c.l.s4 1934713408
        %v571 = vunpack.c.0.s8 %v570
        %v572 = vperm.slane %v566, %v571
        %v574 = vunpack.c.l.s4 1934713408
        %v575 = vunpack.c.0.s8 %v574
        %v576 = vperm.slane %v568, %v575
        %v577 = vrot.slane %v540, 4
        %v578 = vsel %vm381, %v577, %v528
        %v579 = vrot.slane %v528, 4
        %v580 = vsel %vm381, %v540, %v579
        %v582 = vunpack.c.l.s4 1934713408
        %v583 = vunpack.c.0.s8 %v582
        %v584 = vperm.slane %v578, %v583
        %v586 = vunpack.c.l.s4 1934713408
        %v587 = vunpack.c.0.s8 %v586
        %v588 = vperm.slane %v580, %v587
        %v589 = vrot.slane %v572, 4
        %v590 = vsel %vm381, %v589, %v548
        %v591 = vrot.slane %v548, 4
        %v592 = vsel %vm381, %v572, %v591
        %v593 = vrot.slane %v576, 4
        %v594 = vsel %vm381, %v593, %v552
        %v595 = vrot.slane %v552, 4
        %v596 = vsel %vm381, %v576, %v595
        %v597 = vrot.slane %v584, 4
        %v598 = vsel %vm381, %v597, %v560
        %v599 = vrot.slane %v560, 4
        %v600 = vsel %vm381, %v584, %v599
        %v601 = vrot.slane %v588, 4
        %v602 = vsel %vm381, %v601, %v564
        %v603 = vrot.slane %v564, 4
        %v604 = vsel %vm381, %v588, %v603
        %vm605 = vcmask 31744
        %606 = vst.msk [vmem:[%s308] sm:$0xff] %vm605, %v590
        %607 = vst.msk [vmem:[%s308 + $0x8] sm:$0xff] %vm605, %v592
        %608 = vst.msk [vmem:[%s308 + $0x10] sm:$0xff] %vm605, %v594
        %609 = vst.msk [vmem:[%s308 + $0x18] sm:$0xff] %vm605, %v596
        %610 = vst.msk [vmem:[%s308 + $0x20] sm:$0xff] %vm605, %v598
        %611 = vst.msk [vmem:[%s308 + $0x28] sm:$0xff] %vm605, %v600
        %612 = vst.msk [vmem:[%s308 + $0x30] sm:$0xff] %vm605, %v602
        %613 = vst.msk [vmem:[%s308 + $0x38] sm:$0xff] %vm605, %v604
        %614 = vrot.lane.b32.xlu0 %v356, 96
        %v615 = vpop.permute.xlu0 %614
        %616 = vrot.lane.b32.xlu0 %v360, 96
        %v617 = vpop.permute.xlu0 %616
        %618 = vrot.lane.b32.xlu0 %v363, 96
        %v619 = vpop.permute.xlu0 %618
        %620 = vrot.lane.b32.xlu0 %v366, 96
        %v621 = vpop.permute.xlu0 %620
        %622 = vrot.lane.b32.xlu0 %v369, 96
        %v623 = vpop.permute.xlu0 %622
        %624 = vrot.lane.b32.xlu0 %v372, 96
        %v625 = vpop.permute.xlu0 %624
        %626 = vrot.lane.b32.xlu0 %v375, 96
        %v627 = vpop.permute.xlu0 %626
        %628 = vrot.lane.b32.xlu0 %v378, 96
        %v629 = vpop.permute.xlu0 %628
        %v638 = vrot.slane %v619, 4
        %v639 = vsel %vm381, %v638, %v615
        %v640 = vrot.slane %v615, 4
        %v641 = vsel %vm381, %v619, %v640
        %v643 = vunpack.c.l.s4 1983009808
        %v644 = vunpack.c.0.s8 %v643
        %v645 = vperm.slane %v639, %v644
        %v647 = vunpack.c.l.s4 1983009808
        %v648 = vunpack.c.0.s8 %v647
        %v649 = vperm.slane %v641, %v648
        %v650 = vrot.slane %v621, 4
        %v651 = vsel %vm381, %v650, %v617
        %v652 = vrot.slane %v617, 4
        %v653 = vsel %vm381, %v621, %v652
        %v655 = vunpack.c.l.s4 1983009808
        %v656 = vunpack.c.0.s8 %v655
        %v657 = vperm.slane %v651, %v656
        %v659 = vunpack.c.l.s4 1983009808
        %v660 = vunpack.c.0.s8 %v659
        %v661 = vperm.slane %v653, %v660
        %v662 = vrot.slane %v627, 4
        %v663 = vsel %vm381, %v662, %v623
        %v664 = vrot.slane %v623, 4
        %v665 = vsel %vm381, %v627, %v664
        %v667 = vunpack.c.l.s4 1983009808
        %v668 = vunpack.c.0.s8 %v667
        %v669 = vperm.slane %v663, %v668
        %v671 = vunpack.c.l.s4 1983009808
        %v672 = vunpack.c.0.s8 %v671
        %v673 = vperm.slane %v665, %v672
        %v674 = vrot.slane %v629, 4
        %v675 = vsel %vm381, %v674, %v625
        %v676 = vrot.slane %v625, 4
        %v677 = vsel %vm381, %v629, %v676
        %v679 = vunpack.c.l.s4 1983009808
        %v680 = vunpack.c.0.s8 %v679
        %v681 = vperm.slane %v675, %v680
        %v683 = vunpack.c.l.s4 1983009808
        %v684 = vunpack.c.0.s8 %v683
        %v685 = vperm.slane %v677, %v684
        %v686 = vrot.slane %v657, 4
        %v687 = vsel %vm381, %v686, %v645
        %v688 = vrot.slane %v645, 4
        %v689 = vsel %vm381, %v657, %v688
        %v691 = vunpack.c.l.s4 1934713408
        %v692 = vunpack.c.0.s8 %v691
        %v693 = vperm.slane %v687, %v692
        %v695 = vunpack.c.l.s4 1934713408
        %v696 = vunpack.c.0.s8 %v695
        %v697 = vperm.slane %v689, %v696
        %v698 = vrot.slane %v661, 4
        %v699 = vsel %vm381, %v698, %v649
        %v700 = vrot.slane %v649, 4
        %v701 = vsel %vm381, %v661, %v700
        %v703 = vunpack.c.l.s4 1934713408
        %v704 = vunpack.c.0.s8 %v703
        %v705 = vperm.slane %v699, %v704
        %v707 = vunpack.c.l.s4 1934713408
        %v708 = vunpack.c.0.s8 %v707
        %v709 = vperm.slane %v701, %v708
        %v710 = vrot.slane %v681, 4
        %v711 = vsel %vm381, %v710, %v669
        %v712 = vrot.slane %v669, 4
        %v713 = vsel %vm381, %v681, %v712
        %v715 = vunpack.c.l.s4 1934713408
        %v716 = vunpack.c.0.s8 %v715
        %v717 = vperm.slane %v711, %v716
        %v719 = vunpack.c.l.s4 1934713408
        %v720 = vunpack.c.0.s8 %v719
        %v721 = vperm.slane %v713, %v720
        %v722 = vrot.slane %v685, 4
        %v723 = vsel %vm381, %v722, %v673
        %v724 = vrot.slane %v673, 4
        %v725 = vsel %vm381, %v685, %v724
        %v727 = vunpack.c.l.s4 1934713408
        %v728 = vunpack.c.0.s8 %v727
        %v729 = vperm.slane %v723, %v728
        %v731 = vunpack.c.l.s4 1934713408
        %v732 = vunpack.c.0.s8 %v731
        %v733 = vperm.slane %v725, %v732
        %v734 = vrot.slane %v717, 4
        %v735 = vsel %vm381, %v734, %v693
        %v736 = vrot.slane %v693, 4
        %v737 = vsel %vm381, %v717, %v736
        %v738 = vrot.slane %v721, 4
        %v739 = vsel %vm381, %v738, %v697
        %v740 = vrot.slane %v697, 4
        %v741 = vsel %vm381, %v721, %v740
        %v742 = vrot.slane %v729, 4
        %v743 = vsel %vm381, %v742, %v705
        %v744 = vrot.slane %v705, 4
        %v745 = vsel %vm381, %v729, %v744
        %v746 = vrot.slane %v733, 4
        %v747 = vsel %vm381, %v746, %v709
        %v748 = vrot.slane %v709, 4
        %v749 = vsel %vm381, %v733, %v748
        %v750 = vrot.slane %v739, 4
        %v751 = vsel %vm381, %v750, %v735
        %v752 = vrot.slane %v735, 4
        %v753 = vsel %vm381, %v739, %v752
        %v755 = vunpack.c.l.s4 1983009808
        %v756 = vunpack.c.0.s8 %v755
        %v757 = vperm.slane %v751, %v756
        %v759 = vunpack.c.l.s4 1983009808
        %v760 = vunpack.c.0.s8 %v759
        %v761 = vperm.slane %v753, %v760
        %v762 = vrot.slane %v741, 4
        %v763 = vsel %vm381, %v762, %v737
        %v764 = vrot.slane %v737, 4
        %v765 = vsel %vm381, %v741, %v764
        %v767 = vunpack.c.l.s4 1983009808
        %v768 = vunpack.c.0.s8 %v767
        %v769 = vperm.slane %v763, %v768
        %v771 = vunpack.c.l.s4 1983009808
        %v772 = vunpack.c.0.s8 %v771
        %v773 = vperm.slane %v765, %v772
        %v774 = vrot.slane %v747, 4
        %v775 = vsel %vm381, %v774, %v743
        %v776 = vrot.slane %v743, 4
        %v777 = vsel %vm381, %v747, %v776
        %v779 = vunpack.c.l.s4 1983009808
        %v780 = vunpack.c.0.s8 %v779
        %v781 = vperm.slane %v775, %v780
        %v783 = vunpack.c.l.s4 1983009808
        %v784 = vunpack.c.0.s8 %v783
        %v785 = vperm.slane %v777, %v784
        %v786 = vrot.slane %v749, 4
        %v787 = vsel %vm381, %v786, %v745
        %v788 = vrot.slane %v745, 4
        %v789 = vsel %vm381, %v749, %v788
        %v791 = vunpack.c.l.s4 1983009808
        %v792 = vunpack.c.0.s8 %v791
        %v793 = vperm.slane %v787, %v792
        %v795 = vunpack.c.l.s4 1983009808
        %v796 = vunpack.c.0.s8 %v795
        %v797 = vperm.slane %v789, %v796
        %v798 = vrot.slane %v769, 4
        %v799 = vsel %vm381, %v798, %v757
        %v800 = vrot.slane %v757, 4
        %v801 = vsel %vm381, %v769, %v800
        %v803 = vunpack.c.l.s4 1934713408
        %v804 = vunpack.c.0.s8 %v803
        %v805 = vperm.slane %v799, %v804
        %v807 = vunpack.c.l.s4 1934713408
        %v808 = vunpack.c.0.s8 %v807
        %v809 = vperm.slane %v801, %v808
        %v810 = vrot.slane %v773, 4
        %v811 = vsel %vm381, %v810, %v761
        %v812 = vrot.slane %v761, 4
        %v813 = vsel %vm381, %v773, %v812
        %v815 = vunpack.c.l.s4 1934713408
        %v816 = vunpack.c.0.s8 %v815
        %v817 = vperm.slane %v811, %v816
        %v819 = vunpack.c.l.s4 1934713408
        %v820 = vunpack.c.0.s8 %v819
        %v821 = vperm.slane %v813, %v820
        %v822 = vrot.slane %v793, 4
        %v823 = vsel %vm381, %v822, %v781
        %v824 = vrot.slane %v781, 4
        %v825 = vsel %vm381, %v793, %v824
        %v827 = vunpack.c.l.s4 1934713408
        %v828 = vunpack.c.0.s8 %v827
        %v829 = vperm.slane %v823, %v828
        %v831 = vunpack.c.l.s4 1934713408
        %v832 = vunpack.c.0.s8 %v831
        %v833 = vperm.slane %v825, %v832
        %v834 = vrot.slane %v797, 4
        %v835 = vsel %vm381, %v834, %v785
        %v836 = vrot.slane %v785, 4
        %v837 = vsel %vm381, %v797, %v836
        %v839 = vunpack.c.l.s4 1934713408
        %v840 = vunpack.c.0.s8 %v839
        %v841 = vperm.slane %v835, %v840
        %v843 = vunpack.c.l.s4 1934713408
        %v844 = vunpack.c.0.s8 %v843
        %v845 = vperm.slane %v837, %v844
        %v846 = vrot.slane %v829, 4
        %v847 = vsel %vm381, %v846, %v805
        %v848 = vrot.slane %v805, 4
        %v849 = vsel %vm381, %v829, %v848
        %v850 = vrot.slane %v833, 4
        %v851 = vsel %vm381, %v850, %v809
        %v852 = vrot.slane %v809, 4
        %v853 = vsel %vm381, %v833, %v852
        %v854 = vrot.slane %v841, 4
        %v855 = vsel %vm381, %v854, %v817
        %v856 = vrot.slane %v817, 4
        %v857 = vsel %vm381, %v841, %v856
        %v858 = vrot.slane %v845, 4
        %v859 = vsel %vm381, %v858, %v821
        %v860 = vrot.slane %v821, 4
        %v861 = vsel %vm381, %v845, %v860
        %862 = vst.msk [vmem:[%s316] sm:$0xff] %vm605, %v847
        %863 = vst.msk [vmem:[%s316 + $0x8] sm:$0xff] %vm605, %v849
        %864 = vst.msk [vmem:[%s316 + $0x10] sm:$0xff] %vm605, %v851
        %865 = vst.msk [vmem:[%s316 + $0x18] sm:$0xff] %vm605, %v853
        %866 = vst.msk [vmem:[%s316 + $0x20] sm:$0xff] %vm605, %v855
        %867 = vst.msk [vmem:[%s316 + $0x28] sm:$0xff] %vm605, %v857
        %868 = vst.msk [vmem:[%s316 + $0x30] sm:$0xff] %vm605, %v859
        %869 = vst.msk [vmem:[%s316 + $0x38] sm:$0xff] %vm605, %v861
        %870 = vrot.lane.b32.xlu0 %v356, 64
        %v871 = vpop.permute.xlu0 %870
        %872 = vrot.lane.b32.xlu0 %v360, 64
        %v873 = vpop.permute.xlu0 %872
        %874 = vrot.lane.b32.xlu0 %v363, 64
        %v875 = vpop.permute.xlu0 %874
        %876 = vrot.lane.b32.xlu0 %v366, 64
        %v877 = vpop.permute.xlu0 %876
        %878 = vrot.lane.b32.xlu0 %v369, 64
        %v879 = vpop.permute.xlu0 %878
        %880 = vrot.lane.b32.xlu0 %v372, 64
        %v881 = vpop.permute.xlu0 %880
        %882 = vrot.lane.b32.xlu0 %v375, 64
        %v883 = vpop.permute.xlu0 %882
        %884 = vrot.lane.b32.xlu0 %v378, 64
        %v885 = vpop.permute.xlu0 %884
        %v894 = vrot.slane %v875, 4
        %v895 = vsel %vm381, %v894, %v871
        %v896 = vrot.slane %v871, 4
        %v897 = vsel %vm381, %v875, %v896
        %v899 = vunpack.c.l.s4 1983009808
        %v900 = vunpack.c.0.s8 %v899
        %v901 = vperm.slane %v895, %v900
        %v903 = vunpack.c.l.s4 1983009808
        %v904 = vunpack.c.0.s8 %v903
        %v905 = vperm.slane %v897, %v904
        %v906 = vrot.slane %v877, 4
        %v907 = vsel %vm381, %v906, %v873
        %v908 = vrot.slane %v873, 4
        %v909 = vsel %vm381, %v877, %v908
        %v911 = vunpack.c.l.s4 1983009808
        %v912 = vunpack.c.0.s8 %v911
        %v913 = vperm.slane %v907, %v912
        %v915 = vunpack.c.l.s4 1983009808
        %v916 = vunpack.c.0.s8 %v915
        %v917 = vperm.slane %v909, %v916
        %v918 = vrot.slane %v883, 4
        %v919 = vsel %vm381, %v918, %v879
        %v920 = vrot.slane %v879, 4
        %v921 = vsel %vm381, %v883, %v920
        %v923 = vunpack.c.l.s4 1983009808
        %v924 = vunpack.c.0.s8 %v923
        %v925 = vperm.slane %v919, %v924
        %v927 = vunpack.c.l.s4 1983009808
        %v928 = vunpack.c.0.s8 %v927
        %v929 = vperm.slane %v921, %v928
        %v930 = vrot.slane %v885, 4
        %v931 = vsel %vm381, %v930, %v881
        %v932 = vrot.slane %v881, 4
        %v933 = vsel %vm381, %v885, %v932
        %v935 = vunpack.c.l.s4 1983009808
        %v936 = vunpack.c.0.s8 %v935
        %v937 = vperm.slane %v931, %v936
        %v939 = vunpack.c.l.s4 1983009808
        %v940 = vunpack.c.0.s8 %v939
        %v941 = vperm.slane %v933, %v940
        %v942 = vrot.slane %v913, 4
        %v943 = vsel %vm381, %v942, %v901
        %v944 = vrot.slane %v901, 4
        %v945 = vsel %vm381, %v913, %v944
        %v947 = vunpack.c.l.s4 1934713408
        %v948 = vunpack.c.0.s8 %v947
        %v949 = vperm.slane %v943, %v948
        %v951 = vunpack.c.l.s4 1934713408
        %v952 = vunpack.c.0.s8 %v951
        %v953 = vperm.slane %v945, %v952
        %v954 = vrot.slane %v917, 4
        %v955 = vsel %vm381, %v954, %v905
        %v956 = vrot.slane %v905, 4
        %v957 = vsel %vm381, %v917, %v956
        %v959 = vunpack.c.l.s4 1934713408
        %v960 = vunpack.c.0.s8 %v959
        %v961 = vperm.slane %v955, %v960
        %v963 = vunpack.c.l.s4 1934713408
        %v964 = vunpack.c.0.s8 %v963
        %v965 = vperm.slane %v957, %v964
        %v966 = vrot.slane %v937, 4
        %v967 = vsel %vm381, %v966, %v925
        %v968 = vrot.slane %v925, 4
        %v969 = vsel %vm381, %v937, %v968
        %v971 = vunpack.c.l.s4 1934713408
        %v972 = vunpack.c.0.s8 %v971
        %v973 = vperm.slane %v967, %v972
        %v975 = vunpack.c.l.s4 1934713408
        %v976 = vunpack.c.0.s8 %v975
        %v977 = vperm.slane %v969, %v976
        %v978 = vrot.slane %v941, 4
        %v979 = vsel %vm381, %v978, %v929
        %v980 = vrot.slane %v929, 4
        %v981 = vsel %vm381, %v941, %v980
        %v983 = vunpack.c.l.s4 1934713408
        %v984 = vunpack.c.0.s8 %v983
        %v985 = vperm.slane %v979, %v984
        %v987 = vunpack.c.l.s4 1934713408
        %v988 = vunpack.c.0.s8 %v987
        %v989 = vperm.slane %v981, %v988
        %v990 = vrot.slane %v973, 4
        %v991 = vsel %vm381, %v990, %v949
        %v992 = vrot.slane %v949, 4
        %v993 = vsel %vm381, %v973, %v992
        %v994 = vrot.slane %v977, 4
        %v995 = vsel %vm381, %v994, %v953
        %v996 = vrot.slane %v953, 4
        %v997 = vsel %vm381, %v977, %v996
        %v998 = vrot.slane %v985, 4
        %v999 = vsel %vm381, %v998, %v961
        %v1000 = vrot.slane %v961, 4
        %v1001 = vsel %vm381, %v985, %v1000
        %v1002 = vrot.slane %v989, 4
        %v1003 = vsel %vm381, %v1002, %v965
        %v1004 = vrot.slane %v965, 4
        %v1005 = vsel %vm381, %v989, %v1004
        %v1006 = vrot.slane %v995, 4
        %v1007 = vsel %vm381, %v1006, %v991
        %v1008 = vrot.slane %v991, 4
        %v1009 = vsel %vm381, %v995, %v1008
        %v1011 = vunpack.c.l.s4 1983009808
        %v1012 = vunpack.c.0.s8 %v1011
        %v1013 = vperm.slane %v1007, %v1012
        %v1015 = vunpack.c.l.s4 1983009808
        %v1016 = vunpack.c.0.s8 %v1015
        %v1017 = vperm.slane %v1009, %v1016
        %v1018 = vrot.slane %v997, 4
        %v1019 = vsel %vm381, %v1018, %v993
        %v1020 = vrot.slane %v993, 4
        %v1021 = vsel %vm381, %v997, %v1020
        %v1023 = vunpack.c.l.s4 1983009808
        %v1024 = vunpack.c.0.s8 %v1023
        %v1025 = vperm.slane %v1019, %v1024
        %v1027 = vunpack.c.l.s4 1983009808
        %v1028 = vunpack.c.0.s8 %v1027
        %v1029 = vperm.slane %v1021, %v1028
        %v1030 = vrot.slane %v1003, 4
        %v1031 = vsel %vm381, %v1030, %v999
        %v1032 = vrot.slane %v999, 4
        %v1033 = vsel %vm381, %v1003, %v1032
        %v1035 = vunpack.c.l.s4 1983009808
        %v1036 = vunpack.c.0.s8 %v1035
        %v1037 = vperm.slane %v1031, %v1036
        %v1039 = vunpack.c.l.s4 1983009808
        %v1040 = vunpack.c.0.s8 %v1039
        %v1041 = vperm.slane %v1033, %v1040
        %v1042 = vrot.slane %v1005, 4
        %v1043 = vsel %vm381, %v1042, %v1001
        %v1044 = vrot.slane %v1001, 4
        %v1045 = vsel %vm381, %v1005, %v1044
        %v1047 = vunpack.c.l.s4 1983009808
        %v1048 = vunpack.c.0.s8 %v1047
        %v1049 = vperm.slane %v1043, %v1048
        %v1051 = vunpack.c.l.s4 1983009808
        %v1052 = vunpack.c.0.s8 %v1051
        %v1053 = vperm.slane %v1045, %v1052
        %v1054 = vrot.slane %v1025, 4
        %v1055 = vsel %vm381, %v1054, %v1013
        %v1056 = vrot.slane %v1013, 4
        %v1057 = vsel %vm381, %v1025, %v1056
        %v1059 = vunpack.c.l.s4 1934713408
        %v1060 = vunpack.c.0.s8 %v1059
        %v1061 = vperm.slane %v1055, %v1060
        %v1063 = vunpack.c.l.s4 1934713408
        %v1064 = vunpack.c.0.s8 %v1063
        %v1065 = vperm.slane %v1057, %v1064
        %v1066 = vrot.slane %v1029, 4
        %v1067 = vsel %vm381, %v1066, %v1017
        %v1068 = vrot.slane %v1017, 4
        %v1069 = vsel %vm381, %v1029, %v1068
        %v1071 = vunpack.c.l.s4 1934713408
        %v1072 = vunpack.c.0.s8 %v1071
        %v1073 = vperm.slane %v1067, %v1072
        %v1075 = vunpack.c.l.s4 1934713408
        %v1076 = vunpack.c.0.s8 %v1075
        %v1077 = vperm.slane %v1069, %v1076
        %v1078 = vrot.slane %v1049, 4
        %v1079 = vsel %vm381, %v1078, %v1037
        %v1080 = vrot.slane %v1037, 4
        %v1081 = vsel %vm381, %v1049, %v1080
        %v1083 = vunpack.c.l.s4 1934713408
        %v1084 = vunpack.c.0.s8 %v1083
        %v1085 = vperm.slane %v1079, %v1084
        %v1087 = vunpack.c.l.s4 1934713408
        %v1088 = vunpack.c.0.s8 %v1087
        %v1089 = vperm.slane %v1081, %v1088
        %v1090 = vrot.slane %v1053, 4
        %v1091 = vsel %vm381, %v1090, %v1041
        %v1092 = vrot.slane %v1041, 4
        %v1093 = vsel %vm381, %v1053, %v1092
        %v1095 = vunpack.c.l.s4 1934713408
        %v1096 = vunpack.c.0.s8 %v1095
        %v1097 = vperm.slane %v1091, %v1096
        %v1099 = vunpack.c.l.s4 1934713408
        %v1100 = vunpack.c.0.s8 %v1099
        %v1101 = vperm.slane %v1093, %v1100
        %v1102 = vrot.slane %v1085, 4
        %v1103 = vsel %vm381, %v1102, %v1061
        %v1104 = vrot.slane %v1061, 4
        %v1105 = vsel %vm381, %v1085, %v1104
        %v1106 = vrot.slane %v1089, 4
        %v1107 = vsel %vm381, %v1106, %v1065
        %v1108 = vrot.slane %v1065, 4
        %v1109 = vsel %vm381, %v1089, %v1108
        %v1110 = vrot.slane %v1097, 4
        %v1111 = vsel %vm381, %v1110, %v1073
        %v1112 = vrot.slane %v1073, 4
        %v1113 = vsel %vm381, %v1097, %v1112
        %v1114 = vrot.slane %v1101, 4
        %v1115 = vsel %vm381, %v1114, %v1077
        %v1116 = vrot.slane %v1077, 4
        %v1117 = vsel %vm381, %v1101, %v1116
        %1118 = vst.msk [vmem:[%s324] sm:$0xff] %vm605, %v1103
        %1119 = vst.msk [vmem:[%s324 + $0x8] sm:$0xff] %vm605, %v1105
        %1120 = vst.msk [vmem:[%s324 + $0x10] sm:$0xff] %vm605, %v1107
        %1121 = vst.msk [vmem:[%s324 + $0x18] sm:$0xff] %vm605, %v1109
        %1122 = vst.msk [vmem:[%s324 + $0x20] sm:$0xff] %vm605, %v1111
        %1123 = vst.msk [vmem:[%s324 + $0x28] sm:$0xff] %vm605, %v1113
        %1124 = vst.msk [vmem:[%s324 + $0x30] sm:$0xff] %vm605, %v1115
        %1125 = vst.msk [vmem:[%s324 + $0x38] sm:$0xff] %vm605, %v1117
        %p1126 = scmp.lt.s32.totalorder %s25, 1
        %s1127 = scalar_select %p1126, %s25, 1
        %p1128 = scmp.lt.s32.totalorder %s26, 0
        %s1129 = scalar_select %p1128, %s26, 0
        %s1130 = smul.addr %s1127, 8
        %s1131 = sadd.s32 %s1129, %s1130
        %s1132 = smul.addr %s1131, 8
        %s1133 = scalar_lea.vmem %s3, %s1132
        %p1134 = scmp.lt.s32.totalorder %s25, 1
        %s1135 = scalar_select %p1134, %s25, 1
        %p1136 = scmp.lt.s32.totalorder %s26, 0
        %s1137 = scalar_select %p1136, %s26, 0
        %s1138 = smul.addr %s1135, 8
        %s1139 = sadd.s32 %s1137, %s1138
        %s1140 = smul.addr %s1139, 8
        %s1141 = scalar_lea.vmem %s4, %s1140
        %p1142 = scmp.lt.s32.totalorder %s25, 1
        %s1143 = scalar_select %p1142, %s25, 1
        %p1144 = scmp.lt.s32.totalorder %s26, 0
        %s1145 = scalar_select %p1144, %s26, 0
        %s1146 = smul.addr %s1143, 8
        %s1147 = sadd.s32 %s1145, %s1146
        %s1148 = smul.addr %s1147, 8
        %s1149 = scalar_lea.vmem %s5, %s1148
        // Predicated region
        $region41: #{tpu_custom_call.1} parent=31 // pred_check
          %p1150 = pneg %p123
        $region42: #{tpu_custom_call.1} parent=31 // pred_check_branch
          %1152 = sbr.rel (%p1150) target = $region44
        $region43: #{tpu_custom_call.1} parent=31 // pred_region
          _
        $region44: #{tpu_custom_call.1} parent=31 // pred_fallthru
          _
        // Predicated region
        $region45: #{tpu_custom_call.1} parent=31 // pred_check
          %p1153 = pneg %p151
        $region46: #{tpu_custom_call.1} parent=31 // pred_check_branch
          %1155 = sbr.rel (%p1153) target = $region48
        $region47: #{tpu_custom_call.1} parent=31 // pred_region
          _
        $region48: #{tpu_custom_call.1} parent=31 // pred_fallthru
          _
        // Predicated region
        $region49: #{tpu_custom_call.1} parent=31 // pred_check
          %p1156 = pneg %p179
        $region50: #{tpu_custom_call.1} parent=31 // pred_check_branch
          %1158 = sbr.rel (%p1156) target = $region52
        $region51: #{tpu_custom_call.1} parent=31 // pred_region
          _
        $region52: #{tpu_custom_call.1} parent=31 // pred_fallthru
          _
      $region32: #{tpu_custom_call.1} parent=5 // pred_fallthru
        _
      %p1159 = scmp.le.s32.totalorder 2, %s16
      // Predicated region
      $region53: #{tpu_custom_call.1} parent=5 // pred_check
        %p1160 = pneg %p1159
      $region54: #{tpu_custom_call.1} parent=5 // pred_check_branch
        %1162 = sbr.rel (%p1160) target = $region56
      $region55: #{tpu_custom_call.1} parent=5 // pred_region
        %s1163 = ssub.s32 %s16, 2
        // Predicated region
        $region57: #{tpu_custom_call.1} parent=55 // pred_check
          %p1164 = pneg %p129
        $region58: #{tpu_custom_call.1} parent=55 // pred_check_branch
          %1166 = sbr.rel (%p1164) target = $region60
        $region59: #{tpu_custom_call.1} parent=55 // pred_region
          %p1167 = scmp.lt.s32.totalorder %s27, 1
          %s1168 = scalar_select %p1167, %s27, 1
          %p1169 = scmp.lt.s32.totalorder %s28, 0
          %s1170 = scalar_select %p1169, %s28, 0
          %s1171 = smul.addr %s1168, 8
          %s1172 = sadd.s32 %s1170, %s1171
          %s1173 = smul.addr %s1172, 8
          %s1174 = scalar_lea.vmem %s3, %s1173
        $region60: #{tpu_custom_call.1} parent=55 // pred_fallthru
          _
        // Predicated region
        $region61: #{tpu_custom_call.1} parent=55 // pred_check
          %p1175 = pneg %p157
        $region62: #{tpu_custom_call.1} parent=55 // pred_check_branch
          %1177 = sbr.rel (%p1175) target = $region64
        $region63: #{tpu_custom_call.1} parent=55 // pred_region
          %p1178 = scmp.lt.s32.totalorder %s27, 1
          %s1179 = scalar_select %p1178, %s27, 1
          %p1180 = scmp.lt.s32.totalorder %s28, 0
          %s1181 = scalar_select %p1180, %s28, 0
          %s1182 = smul.addr %s1179, 8
          %s1183 = sadd.s32 %s1181, %s1182
          %s1184 = smul.addr %s1183, 8
          %s1185 = scalar_lea.vmem %s4, %s1184
        $region64: #{tpu_custom_call.1} parent=55 // pred_fallthru
          _
        // Predicated region
        $region65: #{tpu_custom_call.1} parent=55 // pred_check
          %p1186 = pneg %p185
        $region66: #{tpu_custom_call.1} parent=55 // pred_check_branch
          %1188 = sbr.rel (%p1186) target = $region68
        $region67: #{tpu_custom_call.1} parent=55 // pred_region
          %p1189 = scmp.lt.s32.totalorder %s27, 1
          %s1190 = scalar_select %p1189, %s27, 1
          %p1191 = scmp.lt.s32.totalorder %s28, 0
          %s1192 = scalar_select %p1191, %s28, 0
          %s1193 = smul.addr %s1190, 8
          %s1194 = sadd.s32 %s1192, %s1193
          %s1195 = smul.addr %s1194, 8
          %s1196 = scalar_lea.vmem %s5, %s1195
        $region68: #{tpu_custom_call.1} parent=55 // pred_fallthru
          _
      $region56: #{tpu_custom_call.1} parent=5 // pred_fallthru
        _
    $region6: #{tpu_custom_call.1} parent=1 // loop_footer
      %s20 = sadd.s32 1, %s16
    $region7: #{tpu_custom_call.1} parent=1 // loop_footer_branch
      %15 = sbr.rel target = $region3
    $region8: #{tpu_custom_call.1} parent=1 // loop_exit
      _
    %1197 = vsyncpa [#allocation3], 1
    %s1198 = scalar_lea.sflag [#allocation3], 1
    %1199 = vsyncpa %s1198, 1
    %1200 = vsyncpa [#allocation5], 1

// kernel: tpu_custom_call.1
$region0: #{tpu_custom_call.1}
  #allocation0 [shape = 'u32[]', space=smem, size = 0x4, offset = 0x4, fixed_abs, tag = 'smem constant byte address 0x4 - core index']
  #allocation1 [shape = 'u32[72,128]{1,0:T(1,128)}', space=vmem, size = 0x9000, scoped, tag = 'internal scratch']
  %s0 = inlined_call_operand.hbm [shape: f32[2,8,32], index: 0, kind: input, shape index: {}]
  %s1 = inlined_call_operand.hbm [shape: f32[32,96], index: 1, kind: input, shape index: {}]
  %s2 = inlined_call_operand.vmem [shape: f32[1,96], index: 2, kind: input, shape index: {}]
  %s3 = inlined_call_operand.vmem [shape: f32[2,8,8,4], index: 3, kind: output, shape index: {0}]
  %s4 = inlined_call_operand.vmem [shape: f32[2,8,8,4], index: 4, kind: output, shape index: {1}]
  %s5 = inlined_call_operand.vmem [shape: f32[2,8,8,4], index: 5, kind: output, shape index: {2}]
  %6 = xla_tuple %s3, %s4, %s5
  %s7 = sld [smem:[#allocation0]]
  $region69: #{tpu_custom_call.1} parent=0
    _
  %s9 = ssub.s32 1, %s7
  %s10 = scalar_select 0, %s9, %s7
  $region1: #{tpu_custom_call.1} parent=0
    #allocation2 [shape = 'u8[8192]{0}', space=vmem, size = 0x2000, scoped, tag = 'input window, operand 0']
    #allocation3 [shape = 's32[2]{0}', space=sflag, size = 0x8, scoped, tag = 'scoped memory for tpu_custom_call.1']
    #allocation4 [shape = 'u8[16384]{0}', space=vmem, size = 0x4000, scoped, tag = 'input window, operand 1, single buffered']
    #allocation5 [shape = 's32[1]{0}', space=sflag, size = 0x4, scoped, tag = 'scoped memory for tpu_custom_call.1']
    %11 = vsyncpa [#allocation3], 0
    %s12 = scalar_lea.sflag [#allocation3], 1
    %13 = vsyncpa %s12, 0
    %14 = vsyncpa [#allocation5], 0
    loop: start=0, step=1, limit=4
    $region2: #{tpu_custom_call.1} parent=1 // loop_pre_header
      _
    $region3: #{tpu_custom_call.1} parent=1 // loop_header
      %s16 = sphi 0, %s20
      %p17 = scmp.ge.s32.totalorder %s16, 4
      %s23 = sphi 0, %s35
      %s24 = sphi 0, %s31
      %s25 = sphi 0, %s23
      %s26 = sphi 0, %s24
      %s27 = sphi 0, %s25
      %s28 = sphi 0, %s26
      %s40 = sphi 0, %s42
      %s43 = sphi 0, %s40
      %s44 = sphi 0, %s43
      %s60 = sphi 0, %s44
      %s64 = sphi 0, %s64
      %s66 = sphi 0, %s64
      %s67 = sphi 0, %s66
      %s81 = sphi 0, %s67
      %s85 = sphi 0, %s85
      %s87 = sphi 0, %s85
      %s88 = sphi 0, %s87
      %s102 = sphi 0, %s88
      %s110 = sphi 0, %s112
      %s113 = sphi 0, %s110
      %s114 = sphi 0, %s113
      %s130 = sphi 0, %s114
      %s138 = sphi 0, %s140
      %s141 = sphi 0, %s138
      %s142 = sphi 0, %s141
      %s158 = sphi 0, %s142
      %s166 = sphi 0, %s168
      %s169 = sphi 0, %s166
      %s170 = sphi 0, %s169
      %s186 = sphi 0, %s170
    $region4: #{tpu_custom_call.1} parent=1 // loop_header_branch
      %19 = sbr.rel (%p17) target = $region8
    $region5: #{tpu_custom_call.1} parent=1 // loop_body
      %s21 = ssub.s32 %s16, 1
      %s22 = ssub.s32 %s16, 2
      %s29 = sadd.s32 1, %s24
      %p30 = scmp.ge.s32.totalorder %s29, 1
      %s31 = scalar_select %p30, 0, %s29
      %s32 = sadd.s32 1, %s23
      %s33 = scalar_select %p30, %s32, %s23
      %p34 = scmp.ge.s32.totalorder %s33, 2
      %s35 = scalar_select %p34, 0, %s33
      %s36 = ssub.s32 %s23, %s35
      %s37 = ssub.s32 %s24, %s31
      %s38 = sor.u32 %s36, %s37
      %p39 = scmp.eq.s32.totalorder %s38, 0
      %s41 = sadd.s32 %s40, 1
      %s42 = scalar_select %p39, %s40, %s41
      %p45 = pneg %p39
      %p46 = scmp.eq.s32.totalorder %s16, 1
      %p47 = por %p45, %p46
      %p48 = scmp.ne.s32.totalorder %s40, %s43
      %p49 = scmp.eq.s32.totalorder %s16, 0
      %p50 = por %p48, %p49
      %p51 = scmp.ne.s32.totalorder %s40, %s43
      %p52 = scmp.eq.s32.totalorder %s21, 1
      %p53 = por %p51, %p52
      %p54 = scmp.ne.s32.totalorder %s43, %s44
      %p55 = scmp.eq.s32.totalorder %s21, 0
      %p56 = por %p54, %p55
      %p57 = scmp.ne.s32.totalorder %s43, %s44
      %p58 = scmp.eq.s32.totalorder %s22, 1
      %p59 = por %p57, %p58
      %p61 = scmp.ne.s32.totalorder %s44, %s60
      %p62 = scmp.eq.s32.totalorder %s22, 0
      %p63 = por %p61, %p62
      %s65 = sadd.s32 %s64, 1
      %p68 = scmp.eq.s32.totalorder %s16, 1
      %p69 = scmp.ne.s32.totalorder %s64, %s66
      %p70 = scmp.eq.s32.totalorder %s16, 0
      %p71 = por %p69, %p70
      %p72 = scmp.ne.s32.totalorder %s64, %s66
      %p73 = scmp.eq.s32.totalorder %s21, 1
      %p74 = por %p72, %p73
      %p75 = scmp.ne.s32.totalorder %s66, %s67
      %p76 = scmp.eq.s32.totalorder %s21, 0
      %p77 = por %p75, %p76
      %p78 = scmp.ne.s32.totalorder %s66, %s67
      %p79 = scmp.eq.s32.totalorder %s22, 1
      %p80 = por %p78, %p79
      %p82 = scmp.ne.s32.totalorder %s67, %s81
      %p83 = scmp.eq.s32.totalorder %s22, 0
      %p84 = por %p82, %p83
      %s86 = sadd.s32 %s85, 1
      %p89 = scmp.eq.s32.totalorder %s16, 1
      %p90 = scmp.ne.s32.totalorder %s85, %s87
      %p91 = scmp.eq.s32.totalorder %s16, 0
      %p92 = por %p90, %p91
      %p93 = scmp.ne.s32.totalorder %s85, %s87
      %p94 = scmp.eq.s32.totalorder %s21, 1
      %p95 = por %p93, %p94
      %p96 = scmp.ne.s32.totalorder %s87, %s88
      %p97 = scmp.eq.s32.totalorder %s21, 0
      %p98 = por %p96, %p97
      %p99 = scmp.ne.s32.totalorder %s87, %s88
      %p100 = scmp.eq.s32.totalorder %s22, 1
      %p101 = por %p99, %p100
      %p103 = scmp.ne.s32.totalorder %s88, %s102
      %p104 = scmp.eq.s32.totalorder %s22, 0
      %p105 = por %p103, %p104
      %s106 = ssub.s32 %s23, %s35
      %s107 = ssub.s32 %s24, %s31
      %s108 = sor.u32 %s106, %s107
      %p109 = scmp.eq.s32.totalorder %s108, 0
      %s111 = sadd.s32 %s110, 1
      %s112 = scalar_select %p109, %s110, %s111
      %p115 = pneg %p109
      %p116 = scmp.eq.s32.totalorder %s16, 1
      %p117 = por %p115, %p116
      %p118 = scmp.ne.s32.totalorder %s110, %s113
      %p119 = scmp.eq.s32.totalorder %s16, 0
      %p120 = por %p118, %p119
      %p121 = scmp.ne.s32.totalorder %s110, %s113
      %p122 = scmp.eq.s32.totalorder %s21, 1
      %p123 = por %p121, %p122
      %p124 = scmp.ne.s32.totalorder %s113, %s114
      %p125 = scmp.eq.s32.totalorder %s21, 0
      %p126 = por %p124, %p125
      %p127 = scmp.ne.s32.totalorder %s113, %s114
      %p128 = scmp.eq.s32.totalorder %s22, 1
      %p129 = por %p127, %p128
      %p131 = scmp.ne.s32.totalorder %s114, %s130
      %p132 = scmp.eq.s32.totalorder %s22, 0
      %p133 = por %p131, %p132
      %s134 = ssub.s32 %s23, %s35
      %s135 = ssub.s32 %s24, %s31
      %s136 = sor.u32 %s134, %s135
      %p137 = scmp.eq.s32.totalorder %s136, 0
      %s139 = sadd.s32 %s138, 1
      %s140 = scalar_select %p137, %s138, %s139
      %p143 = pneg %p137
      %p144 = scmp.eq.s32.totalorder %s16, 1
      %p145 = por %p143, %p144
      %p146 = scmp.ne.s32.totalorder %s138, %s141
      %p147 = scmp.eq.s32.totalorder %s16, 0
      %p148 = por %p146, %p147
      %p149 = scmp.ne.s32.totalorder %s138, %s141
      %p150 = scmp.eq.s32.totalorder %s21, 1
      %p151 = por %p149, %p150
      %p152 = scmp.ne.s32.totalorder %s141, %s142
      %p153 = scmp.eq.s32.totalorder %s21, 0
      %p154 = por %p152, %p153
      %p155 = scmp.ne.s32.totalorder %s141, %s142
      %p156 = scmp.eq.s32.totalorder %s22, 1
      %p157 = por %p155, %p156
      %p159 = scmp.ne.s32.totalorder %s142, %s158
      %p160 = scmp.eq.s32.totalorder %s22, 0
      %p161 = por %p159, %p160
      %s162 = ssub.s32 %s23, %s35
      %s163 = ssub.s32 %s24, %s31
      %s164 = sor.u32 %s162, %s163
      %p165 = scmp.eq.s32.totalorder %s164, 0
      %s167 = sadd.s32 %s166, 1
      %s168 = scalar_select %p165, %s166, %s167
      %p171 = pneg %p165
      %p172 = scmp.eq.s32.totalorder %s16, 1
      %p173 = por %p171, %p172
      %p174 = scmp.ne.s32.totalorder %s166, %s169
      %p175 = scmp.eq.s32.totalorder %s16, 0
      %p176 = por %p174, %p175
      %p177 = scmp.ne.s32.totalorder %s166, %s169
      %p178 = scmp.eq.s32.totalorder %s21, 1
      %p179 = por %p177, %p178
      %p180 = scmp.ne.s32.totalorder %s169, %s170
      %p181 = scmp.eq.s32.totalorder %s21, 0
      %p182 = por %p180, %p181
      %p183 = scmp.ne.s32.totalorder %s169, %s170
      %p184 = scmp.eq.s32.totalorder %s22, 1
      %p185 = por %p183, %p184
      %p187 = scmp.ne.s32.totalorder %s170, %s186
      %p188 = scmp.eq.s32.totalorder %s22, 0
      %p189 = por %p187, %p188
      %p190 = scmp.le.s32.totalorder 1, %s16
      %p191 = scmp.lt.s32.totalorder %s16, 3
      %p192 = pnand %p190, %p191
      %p193 = pneg %p192
      // Predicated region
      $region9: #{tpu_custom_call.1} parent=5 // pred_check
        _
      $region10: #{tpu_custom_call.1} parent=5 // pred_check_branch
        %195 = sbr.rel (%p192) target = $region12
      $region11: #{tpu_custom_call.1} parent=5 // pred_region
        %s196 = ssub.s32 %s16, 1
        // Predicated region
        $region13: #{tpu_custom_call.1} parent=11 // pred_check
          %p197 = pneg %p77
        $region14: #{tpu_custom_call.1} parent=11 // pred_check_branch
          %199 = sbr.rel (%p197) target = $region16
        $region15: #{tpu_custom_call.1} parent=11 // pred_region
          %201 = vsyncadd [#allocation5], 0
          %s202 = sshll.u32 %s1, 4
          %s203 = int_to_ptr.hbm [resolvable:$true] %s202
          %s204 = sshll.u32 [#allocation4], 4
          %s205 = int_to_ptr.vmem [resolvable:$true] %s204
          %210 = dma.hbm_to_vmem [thread:$0]  %s203, 512, %s205, [#allocation5], 128, 128, 8
        $region16: #{tpu_custom_call.1} parent=11 // pred_fallthru
          _
        // Predicated region
        $region17: #{tpu_custom_call.1} parent=11 // pred_check
          %p211 = pneg %p98
        $region18: #{tpu_custom_call.1} parent=11 // pred_check_branch
          %213 = sbr.rel (%p211) target = $region20
        $region19: #{tpu_custom_call.1} parent=11 // pred_region
          _
        $region20: #{tpu_custom_call.1} parent=11 // pred_fallthru
          _
      $region12: #{tpu_custom_call.1} parent=5 // pred_fallthru
        _
      %p214 = scmp.lt.s32.totalorder %s16, 2
      // Predicated region
      $region21: #{tpu_custom_call.1} parent=5 // pred_check
        %p215 = pneg %p214
      $region22: #{tpu_custom_call.1} parent=5 // pred_check_branch
        %217 = sbr.rel (%p215) target = $region24
      $region23: #{tpu_custom_call.1} parent=5 // pred_region
        // Predicated region
        $region25: #{tpu_custom_call.1} parent=23 // pred_check
          %p218 = pneg %p50
        $region26: #{tpu_custom_call.1} parent=23 // pred_check_branch
          %220 = sbr.rel (%p218) target = $region28
        $region27: #{tpu_custom_call.1} parent=23 // pred_region
          %s221 = sand.u32 %s40, 1
          %s222 = scalar_lea.sflag [#allocation3], %s221
          %s223 = sand.u32 %s40, 1
          %s224 = smul.addr %s223, 8
          %s225 = scalar_lea.vmem [#allocation2], %s224
          %227 = vsyncadd %s222, 0
          %s228 = sadd.s32 %s24, %s23
          %s229 = smul.addr %s228, 8
          %s230 = scalar_lea.hbm %s0, %s229
          %s232 = sshll.u32 %s230, 4
          %s233 = int_to_ptr.hbm [resolvable:$true] %s232
          %s234 = sshll.u32 %s225, 4
          %s235 = int_to_ptr.vmem [resolvable:$true] %s234
          %237 = dma.hbm_to_vmem [thread:$0]  %s233, 128, %s235, %s222
        $region28: #{tpu_custom_call.1} parent=23 // pred_fallthru
          _
      $region24: #{tpu_custom_call.1} parent=5 // pred_fallthru
        _
      %p238 = scmp.le.s32.totalorder 1, %s16
      %p239 = scmp.lt.s32.totalorder %s16, 3
      %p240 = pnand %p238, %p239
      %p241 = pneg %p240
      // Predicated region
      $region29: #{tpu_custom_call.1} parent=5 // pred_check
        _
      $region30: #{tpu_custom_call.1} parent=5 // pred_check_branch
        %243 = sbr.rel (%p240) target = $region32
      $region31: #{tpu_custom_call.1} parent=5 // pred_region
        %s244 = ssub.s32 %s16, 1
        %s245 = sand.u32 %s43, 1
        %s246 = scalar_lea.sflag [#allocation3], %s245
        %s247 = sand.u32 %s43, 1
        %s248 = smul.addr %s247, 8
        %s249 = scalar_lea.vmem [#allocation2], %s248
        // Predicated region
        $region33: #{tpu_custom_call.1} parent=31 // pred_check
          %p250 = pneg %p56
        $region34: #{tpu_custom_call.1} parent=31 // pred_check_branch
          %252 = sbr.rel (%p250) target = $region36
        $region35: #{tpu_custom_call.1} parent=31 // pred_region
          %254 = dma.done %s246, 128
        $region36: #{tpu_custom_call.1} parent=31 // pred_fallthru
          _
        // Predicated region
        $region37: #{tpu_custom_call.1} parent=31 // pred_check
          %p255 = pneg %p77
        $region38: #{tpu_custom_call.1} parent=31 // pred_check_branch
          %257 = sbr.rel (%p255) target = $region40
        $region39: #{tpu_custom_call.1} parent=31 // pred_region
          %259 = dma.done [#allocation5], 512
        $region40: #{tpu_custom_call.1} parent=31 // pred_fallthru
          _
        %s260 = sand.u32 %s43, 1
        %s261 = scalar_lea.sflag [#allocation3], %s260
        %s262 = sand.u32 %s43, 1
        %s263 = smul.addr %s262, 8
        %s264 = scalar_lea.vmem [#allocation2], %s263
        %p265 = pneg %p56
        %p266 = pneg %p53
        %p267 = pneg %p77
        %p268 = pneg %p74
        %p269 = pneg %p98
        %p270 = pneg %p95
        %p271 = pneg %p126
        %p272 = pneg %p123
        %p273 = scmp.lt.s32.totalorder %s25, 1
        %s274 = scalar_select %p273, %s25, 1
        %p275 = scmp.lt.s32.totalorder %s26, 0
        %s276 = scalar_select %p275, %s26, 0
        %s277 = smul.addr %s274, 8
        %s278 = sadd.s32 %s276, %s277
        %s279 = smul.addr %s278, 8
        %s280 = scalar_lea.vmem %s3, %s279
        %p281 = pneg %p154
        %p282 = pneg %p151
        %p283 = scmp.lt.s32.totalorder %s25, 1
        %s284 = scalar_select %p283, %s25, 1
        %p285 = scmp.lt.s32.totalorder %s26, 0
        %s286 = scalar_select %p285, %s26, 0
        %s287 = smul.addr %s284, 8
        %s288 = sadd.s32 %s286, %s287
        %s289 = smul.addr %s288, 8
        %s290 = scalar_lea.vmem %s4, %s289
        %p291 = pneg %p182
        %p292 = pneg %p179
        %p293 = scmp.lt.s32.totalorder %s25, 1
        %s294 = scalar_select %p293, %s25, 1
        %p295 = scmp.lt.s32.totalorder %s26, 0
        %s296 = scalar_select %p295, %s26, 0
        %s297 = smul.addr %s294, 8
        %s298 = sadd.s32 %s296, %s297
        %s299 = smul.addr %s298, 8
        %s300 = scalar_lea.vmem %s5, %s299
        %p301 = scmp.lt.s32.totalorder %s25, 1
        %s302 = scalar_select %p301, %s25, 1
        %p303 = scmp.lt.s32.totalorder %s26, 0
        %s304 = scalar_select %p303, %s26, 0
        %s305 = smul.addr %s302, 8
        %s306 = sadd.s32 %s304, %s305
        %s307 = smul.addr %s306, 8
        %s308 = scalar_lea.vmem %s3, %s307
        %p309 = scmp.lt.s32.totalorder %s25, 1
        %s310 = scalar_select %p309, %s25, 1
        %p311 = scmp.lt.s32.totalorder %s26, 0
        %s312 = scalar_select %p311, %s26, 0
        %s313 = smul.addr %s310, 8
        %s314 = sadd.s32 %s312, %s313
        %s315 = smul.addr %s314, 8
        %s316 = scalar_lea.vmem %s4, %s315
        %p317 = scmp.lt.s32.totalorder %s25, 1
        %s318 = scalar_select %p317, %s25, 1
        %p319 = scmp.lt.s32.totalorder %s26, 0
        %s320 = scalar_select %p319, %s26, 0
        %s321 = smul.addr %s318, 8
        %s322 = sadd.s32 %s320, %s321
        %s323 = smul.addr %s322, 8
        %s324 = scalar_lea.vmem %s5, %s323
        %v325 = vld [vmem:[%s249] sm:$0xff]
        %v326 = vld [vmem:[#allocation4] sm:$0xff]
        %v327 = vld [vmem:[#allocation4 + $0x8] sm:$0xff]
        %v328 = vld [vmem:[#allocation4 + $0x10] sm:$0xff]
        %v329 = vld [vmem:[#allocation4 + $0x18] sm:$0xff]
        %v330 = vld [vmem:[%s2] sm:$0x1]
        %v332 = vperm.slane %v330, 0
        %vm334 = vcmask 261120
        %v336 = vsel %vm334, %v325, 0
        %338 = vmatpush.msra.mxu0 0.0
        %339 = vmatpush.msra.mxu0 0.0
        %340 = vmatpush.msra.mxu0 0.0
        %341 = vmatpush.msra.mxu0 0.0
        %342 = vmatpush.msra.mxu0 0.0
        %343 = vmatpush.msra.mxu0 0.0
        %344 = vmatpush.msra.mxu0 0.0
        %345 = vmatpush.msra.mxu0 0.0
        %346 = vmatpush.msra.mxu0 0.0
        %347 = vmatpush.msra.mxu0 0.0
        %348 = vmatpush.msra.mxu0 0.0
        %349 = vmatpush.msra.mxu0 0.0
        %350 = vmatpush.msra.mxu0 %v329
        %351 = vmatpush.msra.mxu0 %v328
        %352 = vmatpush.msra.mxu0 %v327
        %353 = vmatpush.msra.mxu0 %v326
        %354 = vmatmul.f32.gmra.mxu0 %v336
        %v355 = vpop.f32.mrf.mxu0
        %v356 = vadd.f32 %v332, %v355
        %357 = vdwg.mxu0
        %359 = vrot.lane.b32.xlu0 %v356, 124
        %v360 = vpop.permute.xlu0 %359
        %362 = vrot.lane.b32.xlu0 %v356, 120
        %v363 = vpop.permute.xlu0 %362
        %365 = vrot.lane.b32.xlu0 %v356, 116
        %v366 = vpop.permute.xlu0 %365
        %368 = vrot.lane.b32.xlu0 %v356, 112
        %v369 = vpop.permute.xlu0 %368
        %371 = vrot.lane.b32.xlu0 %v356, 108
        %v372 = vpop.permute.xlu0 %371
        %374 = vrot.lane.b32.xlu0 %v356, 104
        %v375 = vpop.permute.xlu0 %374
        %377 = vrot.lane.b32.xlu0 %v356, 100
        %v378 = vpop.permute.xlu0 %377
        %v380 = vrot.slane %v363, 4
        %vm381 = vcmask 1047556
        %v382 = vsel %vm381, %v380, %v356
        %v383 = vrot.slane %v356, 4
        %v384 = vsel %vm381, %v363, %v383
        %v386 = vunpack.c.l.s4 1983009808
        %v387 = vunpack.c.0.s8 %v386
        %v388 = vperm.slane %v382, %v387
        %v390 = vunpack.c.l.s4 1983009808
        %v391 = vunpack.c.0.s8 %v390
        %v392 = vperm.slane %v384, %v391
        %v393 = vrot.slane %v366, 4
        %v394 = vsel %vm381, %v393, %v360
        %v395 = vrot.slane %v360, 4
        %v396 = vsel %vm381, %v366, %v395
        %v398 = vunpack.c.l.s4 1983009808
        %v399 = vunpack.c.0.s8 %v398
        %v400 = vperm.slane %v394, %v399
        %v402 = vunpack.c.l.s4 1983009808
        %v403 = vunpack.c.0.s8 %v402
        %v404 = vperm.slane %v396, %v403
        %v405 = vrot.slane %v375, 4
        %v406 = vsel %vm381, %v405, %v369
        %v407 = vrot.slane %v369, 4
        %v408 = vsel %vm381, %v375, %v407
        %v410 = vunpack.c.l.s4 1983009808
        %v411 = vunpack.c.0.s8 %v410
        %v412 = vperm.slane %v406, %v411
        %v414 = vunpack.c.l.s4 1983009808
        %v415 = vunpack.c.0.s8 %v414
        %v416 = vperm.slane %v408, %v415
        %v417 = vrot.slane %v378, 4
        %v418 = vsel %vm381, %v417, %v372
        %v419 = vrot.slane %v372, 4
        %v420 = vsel %vm381, %v378, %v419
        %v422 = vunpack.c.l.s4 1983009808
        %v423 = vunpack.c.0.s8 %v422
        %v424 = vperm.slane %v418, %v423
        %v426 = vunpack.c.l.s4 1983009808
        %v427 = vunpack.c.0.s8 %v426
        %v428 = vperm.slane %v420, %v427
        %v429 = vrot.slane %v400, 4
        %v430 = vsel %vm381, %v429, %v388
        %v431 = vrot.slane %v388, 4
        %v432 = vsel %vm381, %v400, %v431
        %v434 = vunpack.c.l.s4 1934713408
        %v435 = vunpack.c.0.s8 %v434
        %v436 = vperm.slane %v430, %v435
        %v438 = vunpack.c.l.s4 1934713408
        %v439 = vunpack.c.0.s8 %v438
        %v440 = vperm.slane %v432, %v439
        %v441 = vrot.slane %v404, 4
        %v442 = vsel %vm381, %v441, %v392
        %v443 = vrot.slane %v392, 4
        %v444 = vsel %vm381, %v404, %v443
        %v446 = vunpack.c.l.s4 1934713408
        %v447 = vunpack.c.0.s8 %v446
        %v448 = vperm.slane %v442, %v447
        %v450 = vunpack.c.l.s4 1934713408
        %v451 = vunpack.c.0.s8 %v450
        %v452 = vperm.slane %v444, %v451
        %v453 = vrot.slane %v424, 4
        %v454 = vsel %vm381, %v453, %v412
        %v455 = vrot.slane %v412, 4
        %v456 = vsel %vm381, %v424, %v455
        %v458 = vunpack.c.l.s4 1934713408
        %v459 = vunpack.c.0.s8 %v458
        %v460 = vperm.slane %v454, %v459
        %v462 = vunpack.c.l.s4 1934713408
        %v463 = vunpack.c.0.s8 %v462
        %v464 = vperm.slane %v456, %v463
        %v465 = vrot.slane %v428, 4
        %v466 = vsel %vm381, %v465, %v416
        %v467 = vrot.slane %v416, 4
        %v468 = vsel %vm381, %v428, %v467
        %v470 = vunpack.c.l.s4 1934713408
        %v471 = vunpack.c.0.s8 %v470
        %v472 = vperm.slane %v466, %v471
        %v474 = vunpack.c.l.s4 1934713408
        %v475 = vunpack.c.0.s8 %v474
        %v476 = vperm.slane %v468, %v475
        %v477 = vrot.slane %v460, 4
        %v478 = vsel %vm381, %v477, %v436
        %v479 = vrot.slane %v436, 4
        %v480 = vsel %vm381, %v460, %v479
        %v481 = vrot.slane %v464, 4
        %v482 = vsel %vm381, %v481, %v440
        %v483 = vrot.slane %v440, 4
        %v484 = vsel %vm381, %v464, %v483
        %v485 = vrot.slane %v472, 4
        %v486 = vsel %vm381, %v485, %v448
        %v487 = vrot.slane %v448, 4
        %v488 = vsel %vm381, %v472, %v487
        %v489 = vrot.slane %v476, 4
        %v490 = vsel %vm381, %v489, %v452
        %v491 = vrot.slane %v452, 4
        %v492 = vsel %vm381, %v476, %v491
        %v493 = vrot.slane %v482, 4
        %v494 = vsel %vm381, %v493, %v478
        %v495 = vrot.slane %v478, 4
        %v496 = vsel %vm381, %v482, %v495
        %v498 = vunpack.c.l.s4 1983009808
        %v499 = vunpack.c.0.s8 %v498
        %v500 = vperm.slane %v494, %v499
        %v502 = vunpack.c.l.s4 1983009808
        %v503 = vunpack.c.0.s8 %v502
        %v504 = vperm.slane %v496, %v503
        %v505 = vrot.slane %v484, 4
        %v506 = vsel %vm381, %v505, %v480
        %v507 = vrot.slane %v480, 4
        %v508 = vsel %vm381, %v484, %v507
        %v510 = vunpack.c.l.s4 1983009808
        %v511 = vunpack.c.0.s8 %v510
        %v512 = vperm.slane %v506, %v511
        %v514 = vunpack.c.l.s4 1983009808
        %v515 = vunpack.c.0.s8 %v514
        %v516 = vperm.slane %v508, %v515
        %v517 = vrot.slane %v490, 4
        %v518 = vsel %vm381, %v517, %v486
        %v519 = vrot.slane %v486, 4
        %v520 = vsel %vm381, %v490, %v519
        %v522 = vunpack.c.l.s4 1983009808
        %v523 = vunpack.c.0.s8 %v522
        %v524 = vperm.slane %v518, %v523
        %v526 = vunpack.c.l.s4 1983009808
        %v527 = vunpack.c.0.s8 %v526
        %v528 = vperm.slane %v520, %v527
        %v529 = vrot.slane %v492, 4
        %v530 = vsel %vm381, %v529, %v488
        %v531 = vrot.slane %v488, 4
        %v532 = vsel %vm381, %v492, %v531
        %v534 = vunpack.c.l.s4 1983009808
        %v535 = vunpack.c.0.s8 %v534
        %v536 = vperm.slane %v530, %v535
        %v538 = vunpack.c.l.s4 1983009808
        %v539 = vunpack.c.0.s8 %v538
        %v540 = vperm.slane %v532, %v539
        %v541 = vrot.slane %v512, 4
        %v542 = vsel %vm381, %v541, %v500
        %v543 = vrot.slane %v500, 4
        %v544 = vsel %vm381, %v512, %v543
        %v546 = vunpack.c.l.s4 1934713408
        %v547 = vunpack.c.0.s8 %v546
        %v548 = vperm.slane %v542, %v547
        %v550 = vunpack.c.l.s4 1934713408
        %v551 = vunpack.c.0.s8 %v550
        %v552 = vperm.slane %v544, %v551
        %v553 = vrot.slane %v516, 4
        %v554 = vsel %vm381, %v553, %v504
        %v555 = vrot.slane %v504, 4
        %v556 = vsel %vm381, %v516, %v555
        %v558 = vunpack.c.l.s4 1934713408
        %v559 = vunpack.c.0.s8 %v558
        %v560 = vperm.slane %v554, %v559
        %v562 = vunpack.c.l.s4 1934713408
        %v563 = vunpack.c.0.s8 %v562
        %v564 = vperm.slane %v556, %v563
        %v565 = vrot.slane %v536, 4
        %v566 = vsel %vm381, %v565, %v524
        %v567 = vrot.slane %v524, 4
        %v568 = vsel %vm381, %v536, %v567
        %v570 = vunpack.c.l.s4 1934713408
        %v571 = vunpack.c.0.s8 %v570
        %v572 = vperm.slane %v566, %v571
        %v574 = vunpack.c.l.s4 1934713408
        %v575 = vunpack.c.0.s8 %v574
        %v576 = vperm.slane %v568, %v575
        %v577 = vrot.slane %v540, 4
        %v578 = vsel %vm381, %v577, %v528
        %v579 = vrot.slane %v528, 4
        %v580 = vsel %vm381, %v540, %v579
        %v582 = vunpack.c.l.s4 1934713408
        %v583 = vunpack.c.0.s8 %v582
        %v584 = vperm.slane %v578, %v583
        %v586 = vunpack.c.l.s4 1934713408
        %v587 = vunpack.c.0.s8 %v586
        %v588 = vperm.slane %v580, %v587
        %v589 = vrot.slane %v572, 4
        %v590 = vsel %vm381, %v589, %v548
        %v591 = vrot.slane %v548, 4
        %v592 = vsel %vm381, %v572, %v591
        %v593 = vrot.slane %v576, 4
        %v594 = vsel %vm381, %v593, %v552
        %v595 = vrot.slane %v552, 4
        %v596 = vsel %vm381, %v576, %v595
        %v597 = vrot.slane %v584, 4
        %v598 = vsel %vm381, %v597, %v560
        %v599 = vrot.slane %v560, 4
        %v600 = vsel %vm381, %v584, %v599
        %v601 = vrot.slane %v588, 4
        %v602 = vsel %vm381, %v601, %v564
        %v603 = vrot.slane %v564, 4
        %v604 = vsel %vm381, %v588, %v603
        %vm605 = vcmask 31744
        %606 = vst.msk [vmem:[%s308] sm:$0xff] %vm605, %v590
        %607 = vst.msk [vmem:[%s308 + $0x8] sm:$0xff] %vm605, %v592
        %608 = vst.msk [vmem:[%s308 + $0x10] sm:$0xff] %vm605, %v594
        %609 = vst.msk [vmem:[%s308 + $0x18] sm:$0xff] %vm605, %v596
        %610 = vst.msk [vmem:[%s308 + $0x20] sm:$0xff] %vm605, %v598
        %611 = vst.msk [vmem:[%s308 + $0x28] sm:$0xff] %vm605, %v600
        %612 = vst.msk [vmem:[%s308 + $0x30] sm:$0xff] %vm605, %v602
        %613 = vst.msk [vmem:[%s308 + $0x38] sm:$0xff] %vm605, %v604
        %614 = vrot.lane.b32.xlu0 %v356, 96
        %v615 = vpop.permute.xlu0 %614
        %616 = vrot.lane.b32.xlu0 %v360, 96
        %v617 = vpop.permute.xlu0 %616
        %618 = vrot.lane.b32.xlu0 %v363, 96
        %v619 = vpop.permute.xlu0 %618
        %620 = vrot.lane.b32.xlu0 %v366, 96
        %v621 = vpop.permute.xlu0 %620
        %622 = vrot.lane.b32.xlu0 %v369, 96
        %v623 = vpop.permute.xlu0 %622
        %624 = vrot.lane.b32.xlu0 %v372, 96
        %v625 = vpop.permute.xlu0 %624
        %626 = vrot.lane.b32.xlu0 %v375, 96
        %v627 = vpop.permute.xlu0 %626
        %628 = vrot.lane.b32.xlu0 %v378, 96
        %v629 = vpop.permute.xlu0 %628
        %v638 = vrot.slane %v619, 4
        %v639 = vsel %vm381, %v638, %v615
        %v640 = vrot.slane %v615, 4
        %v641 = vsel %vm381, %v619, %v640
        %v643 = vunpack.c.l.s4 1983009808
        %v644 = vunpack.c.0.s8 %v643
        %v645 = vperm.slane %v639, %v644
        %v647 = vunpack.c.l.s4 1983009808
        %v648 = vunpack.c.0.s8 %v647
        %v649 = vperm.slane %v641, %v648
        %v650 = vrot.slane %v621, 4
        %v651 = vsel %vm381, %v650, %v617
        %v652 = vrot.slane %v617, 4
        %v653 = vsel %vm381, %v621, %v652
        %v655 = vunpack.c.l.s4 1983009808
        %v656 = vunpack.c.0.s8 %v655
        %v657 = vperm.slane %v651, %v656
        %v659 = vunpack.c.l.s4 1983009808
        %v660 = vunpack.c.0.s8 %v659
        %v661 = vperm.slane %v653, %v660
        %v662 = vrot.slane %v627, 4
        %v663 = vsel %vm381, %v662, %v623
        %v664 = vrot.slane %v623, 4
        %v665 = vsel %vm381, %v627, %v664
        %v667 = vunpack.c.l.s4 1983009808
        %v668 = vunpack.c.0.s8 %v667
        %v669 = vperm.slane %v663, %v668
        %v671 = vunpack.c.l.s4 1983009808
        %v672 = vunpack.c.0.s8 %v671
        %v673 = vperm.slane %v665, %v672
        %v674 = vrot.slane %v629, 4
        %v675 = vsel %vm381, %v674, %v625
        %v676 = vrot.slane %v625, 4
        %v677 = vsel %vm381, %v629, %v676
        %v679 = vunpack.c.l.s4 1983009808
        %v680 = vunpack.c.0.s8 %v679
        %v681 = vperm.slane %v675, %v680
        %v683 = vunpack.c.l.s4 1983009808
        %v684 = vunpack.c.0.s8 %v683
        %v685 = vperm.slane %v677, %v684
        %v686 = vrot.slane %v657, 4
        %v687 = vsel %vm381, %v686, %v645
        %v688 = vrot.slane %v645, 4
        %v689 = vsel %vm381, %v657, %v688
        %v691 = vunpack.c.l.s4 1934713408
        %v692 = vunpack.c.0.s8 %v691
        %v693 = vperm.slane %v687, %v692
        %v695 = vunpack.c.l.s4 1934713408
        %v696 = vunpack.c.0.s8 %v695
        %v697 = vperm.slane %v689, %v696
        %v698 = vrot.slane %v661, 4
        %v699 = vsel %vm381, %v698, %v649
        %v700 = vrot.slane %v649, 4
        %v701 = vsel %vm381, %v661, %v700
        %v703 = vunpack.c.l.s4 1934713408
        %v704 = vunpack.c.0.s8 %v703
        %v705 = vperm.slane %v699, %v704
        %v707 = vunpack.c.l.s4 1934713408
        %v708 = vunpack.c.0.s8 %v707
        %v709 = vperm.slane %v701, %v708
        %v710 = vrot.slane %v681, 4
        %v711 = vsel %vm381, %v710, %v669
        %v712 = vrot.slane %v669, 4
        %v713 = vsel %vm381, %v681, %v712
        %v715 = vunpack.c.l.s4 1934713408
        %v716 = vunpack.c.0.s8 %v715
        %v717 = vperm.slane %v711, %v716
        %v719 = vunpack.c.l.s4 1934713408
        %v720 = vunpack.c.0.s8 %v719
        %v721 = vperm.slane %v713, %v720
        %v722 = vrot.slane %v685, 4
        %v723 = vsel %vm381, %v722, %v673
        %v724 = vrot.slane %v673, 4
        %v725 = vsel %vm381, %v685, %v724
        %v727 = vunpack.c.l.s4 1934713408
        %v728 = vunpack.c.0.s8 %v727
        %v729 = vperm.slane %v723, %v728
        %v731 = vunpack.c.l.s4 1934713408
        %v732 = vunpack.c.0.s8 %v731
        %v733 = vperm.slane %v725, %v732
        %v734 = vrot.slane %v717, 4
        %v735 = vsel %vm381, %v734, %v693
        %v736 = vrot.slane %v693, 4
        %v737 = vsel %vm381, %v717, %v736
        %v738 = vrot.slane %v721, 4
        %v739 = vsel %vm381, %v738, %v697
        %v740 = vrot.slane %v697, 4
        %v741 = vsel %vm381, %v721, %v740
        %v742 = vrot.slane %v729, 4
        %v743 = vsel %vm381, %v742, %v705
        %v744 = vrot.slane %v705, 4
        %v745 = vsel %vm381, %v729, %v744
        %v746 = vrot.slane %v733, 4
        %v747 = vsel %vm381, %v746, %v709
        %v748 = vrot.slane %v709, 4
        %v749 = vsel %vm381, %v733, %v748
        %v750 = vrot.slane %v739, 4
        %v751 = vsel %vm381, %v750, %v735
        %v752 = vrot.slane %v735, 4
        %v753 = vsel %vm381, %v739, %v752
        %v755 = vunpack.c.l.s4 1983009808
        %v756 = vunpack.c.0.s8 %v755
        %v757 = vperm.slane %v751, %v756
        %v759 = vunpack.c.l.s4 1983009808
        %v760 = vunpack.c.0.s8 %v759
        %v761 = vperm.slane %v753, %v760
        %v762 = vrot.slane %v741, 4
        %v763 = vsel %vm381, %v762, %v737
        %v764 = vrot.slane %v737, 4
        %v765 = vsel %vm381, %v741, %v764
        %v767 = vunpack.c.l.s4 1983009808
        %v768 = vunpack.c.0.s8 %v767
        %v769 = vperm.slane %v763, %v768
        %v771 = vunpack.c.l.s4 1983009808
        %v772 = vunpack.c.0.s8 %v771
        %v773 = vperm.slane %v765, %v772
        %v774 = vrot.slane %v747, 4
        %v775 = vsel %vm381, %v774, %v743
        %v776 = vrot.slane %v743, 4
        %v777 = vsel %vm381, %v747, %v776
        %v779 = vunpack.c.l.s4 1983009808
        %v780 = vunpack.c.0.s8 %v779
        %v781 = vperm.slane %v775, %v780
        %v783 = vunpack.c.l.s4 1983009808
        %v784 = vunpack.c.0.s8 %v783
        %v785 = vperm.slane %v777, %v784
        %v786 = vrot.slane %v749, 4
        %v787 = vsel %vm381, %v786, %v745
        %v788 = vrot.slane %v745, 4
        %v789 = vsel %vm381, %v749, %v788
        %v791 = vunpack.c.l.s4 1983009808
        %v792 = vunpack.c.0.s8 %v791
        %v793 = vperm.slane %v787, %v792
        %v795 = vunpack.c.l.s4 1983009808
        %v796 = vunpack.c.0.s8 %v795
        %v797 = vperm.slane %v789, %v796
        %v798 = vrot.slane %v769, 4
        %v799 = vsel %vm381, %v798, %v757
        %v800 = vrot.slane %v757, 4
        %v801 = vsel %vm381, %v769, %v800
        %v803 = vunpack.c.l.s4 1934713408
        %v804 = vunpack.c.0.s8 %v803
        %v805 = vperm.slane %v799, %v804
        %v807 = vunpack.c.l.s4 1934713408
        %v808 = vunpack.c.0.s8 %v807
        %v809 = vperm.slane %v801, %v808
        %v810 = vrot.slane %v773, 4
        %v811 = vsel %vm381, %v810, %v761
        %v812 = vrot.slane %v761, 4
        %v813 = vsel %vm381, %v773, %v812
        %v815 = vunpack.c.l.s4 1934713408
        %v816 = vunpack.c.0.s8 %v815
        %v817 = vperm.slane %v811, %v816
        %v819 = vunpack.c.l.s4 1934713408
        %v820 = vunpack.c.0.s8 %v819
        %v821 = vperm.slane %v813, %v820
        %v822 = vrot.slane %v793, 4
        %v823 = vsel %vm381, %v822, %v781
        %v824 = vrot.slane %v781, 4
        %v825 = vsel %vm381, %v793, %v824
        %v827 = vunpack.c.l.s4 1934713408
        %v828 = vunpack.c.0.s8 %v827
        %v829 = vperm.slane %v823, %v828
        %v831 = vunpack.c.l.s4 1934713408
        %v832 = vunpack.c.0.s8 %v831
        %v833 = vperm.slane %v825, %v832
        %v834 = vrot.slane %v797, 4
        %v835 = vsel %vm381, %v834, %v785
        %v836 = vrot.slane %v785, 4
        %v837 = vsel %vm381, %v797, %v836
        %v839 = vunpack.c.l.s4 1934713408
        %v840 = vunpack.c.0.s8 %v839
        %v841 = vperm.slane %v835, %v840
        %v843 = vunpack.c.l.s4 1934713408
        %v844 = vunpack.c.0.s8 %v843
        %v845 = vperm.slane %v837, %v844
        %v846 = vrot.slane %v829, 4
        %v847 = vsel %vm381, %v846, %v805
        %v848 = vrot.slane %v805, 4
        %v849 = vsel %vm381, %v829, %v848
        %v850 = vrot.slane %v833, 4
        %v851 = vsel %vm381, %v850, %v809
        %v852 = vrot.slane %v809, 4
        %v853 = vsel %vm381, %v833, %v852
        %v854 = vrot.slane %v841, 4
        %v855 = vsel %vm381, %v854, %v817
        %v856 = vrot.slane %v817, 4
        %v857 = vsel %vm381, %v841, %v856
        %v858 = vrot.slane %v845, 4
        %v859 = vsel %vm381, %v858, %v821
        %v860 = vrot.slane %v821, 4
        %v861 = vsel %vm381, %v845, %v860
        %862 = vst.msk [vmem:[%s316] sm:$0xff] %vm605, %v847
        %863 = vst.msk [vmem:[%s316 + $0x8] sm:$0xff] %vm605, %v849
        %864 = vst.msk [vmem:[%s316 + $0x10] sm:$0xff] %vm605, %v851
        %865 = vst.msk [vmem:[%s316 + $0x18] sm:$0xff] %vm605, %v853
        %866 = vst.msk [vmem:[%s316 + $0x20] sm:$0xff] %vm605, %v855
        %867 = vst.msk [vmem:[%s316 + $0x28] sm:$0xff] %vm605, %v857
        %868 = vst.msk [vmem:[%s316 + $0x30] sm:$0xff] %vm605, %v859
        %869 = vst.msk [vmem:[%s316 + $0x38] sm:$0xff] %vm605, %v861
        %870 = vrot.lane.b32.xlu0 %v356, 64
        %v871 = vpop.permute.xlu0 %870
        %872 = vrot.lane.b32.xlu0 %v360, 64
        %v873 = vpop.permute.xlu0 %872
        %874 = vrot.lane.b32.xlu0 %v363, 64
        %v875 = vpop.permute.xlu0 %874
        %876 = vrot.lane.b32.xlu0 %v366, 64
        %v877 = vpop.permute.xlu0 %876
        %878 = vrot.lane.b32.xlu0 %v369, 64
        %v879 = vpop.permute.xlu0 %878
        %880 = vrot.lane.b32.xlu0 %v372, 64
        %v881 = vpop.permute.xlu0 %880
        %882 = vrot.lane.b32.xlu0 %v375, 64
        %v883 = vpop.permute.xlu0 %882
        %884 = vrot.lane.b32.xlu0 %v378, 64
        %v885 = vpop.permute.xlu0 %884
        %v894 = vrot.slane %v875, 4
        %v895 = vsel %vm381, %v894, %v871
        %v896 = vrot.slane %v871, 4
        %v897 = vsel %vm381, %v875, %v896
        %v899 = vunpack.c.l.s4 1983009808
        %v900 = vunpack.c.0.s8 %v899
        %v901 = vperm.slane %v895, %v900
        %v903 = vunpack.c.l.s4 1983009808
        %v904 = vunpack.c.0.s8 %v903
        %v905 = vperm.slane %v897, %v904
        %v906 = vrot.slane %v877, 4
        %v907 = vsel %vm381, %v906, %v873
        %v908 = vrot.slane %v873, 4
        %v909 = vsel %vm381, %v877, %v908
        %v911 = vunpack.c.l.s4 1983009808
        %v912 = vunpack.c.0.s8 %v911
        %v913 = vperm.slane %v907, %v912
        %v915 = vunpack.c.l.s4 1983009808
        %v916 = vunpack.c.0.s8 %v915
        %v917 = vperm.slane %v909, %v916
        %v918 = vrot.slane %v883, 4
        %v919 = vsel %vm381, %v918, %v879
        %v920 = vrot.slane %v879, 4
        %v921 = vsel %vm381, %v883, %v920
        %v923 = vunpack.c.l.s4 1983009808
        %v924 = vunpack.c.0.s8 %v923
        %v925 = vperm.slane %v919, %v924
        %v927 = vunpack.c.l.s4 1983009808
        %v928 = vunpack.c.0.s8 %v927
        %v929 = vperm.slane %v921, %v928
        %v930 = vrot.slane %v885, 4
        %v931 = vsel %vm381, %v930, %v881
        %v932 = vrot.slane %v881, 4
        %v933 = vsel %vm381, %v885, %v932
        %v935 = vunpack.c.l.s4 1983009808
        %v936 = vunpack.c.0.s8 %v935
        %v937 = vperm.slane %v931, %v936
        %v939 = vunpack.c.l.s4 1983009808
        %v940 = vunpack.c.0.s8 %v939
        %v941 = vperm.slane %v933, %v940
        %v942 = vrot.slane %v913, 4
        %v943 = vsel %vm381, %v942, %v901
        %v944 = vrot.slane %v901, 4
        %v945 = vsel %vm381, %v913, %v944
        %v947 = vunpack.c.l.s4 1934713408
        %v948 = vunpack.c.0.s8 %v947
        %v949 = vperm.slane %v943, %v948
        %v951 = vunpack.c.l.s4 1934713408
        %v952 = vunpack.c.0.s8 %v951
        %v953 = vperm.slane %v945, %v952
        %v954 = vrot.slane %v917, 4
        %v955 = vsel %vm381, %v954, %v905
        %v956 = vrot.slane %v905, 4
        %v957 = vsel %vm381, %v917, %v956
        %v959 = vunpack.c.l.s4 1934713408
        %v960 = vunpack.c.0.s8 %v959
        %v961 = vperm.slane %v955, %v960
        %v963 = vunpack.c.l.s4 1934713408
        %v964 = vunpack.c.0.s8 %v963
        %v965 = vperm.slane %v957, %v964
        %v966 = vrot.slane %v937, 4
        %v967 = vsel %vm381, %v966, %v925
        %v968 = vrot.slane %v925, 4
        %v969 = vsel %vm381, %v937, %v968
        %v971 = vunpack.c.l.s4 1934713408
        %v972 = vunpack.c.0.s8 %v971
        %v973 = vperm.slane %v967, %v972
        %v975 = vunpack.c.l.s4 1934713408
        %v976 = vunpack.c.0.s8 %v975
        %v977 = vperm.slane %v969, %v976
        %v978 = vrot.slane %v941, 4
        %v979 = vsel %vm381, %v978, %v929
        %v980 = vrot.slane %v929, 4
        %v981 = vsel %vm381, %v941, %v980
        %v983 = vunpack.c.l.s4 1934713408
        %v984 = vunpack.c.0.s8 %v983
        %v985 = vperm.slane %v979, %v984
        %v987 = vunpack.c.l.s4 1934713408
        %v988 = vunpack.c.0.s8 %v987
        %v989 = vperm.slane %v981, %v988
        %v990 = vrot.slane %v973, 4
        %v991 = vsel %vm381, %v990, %v949
        %v992 = vrot.slane %v949, 4
        %v993 = vsel %vm381, %v973, %v992
        %v994 = vrot.slane %v977, 4
        %v995 = vsel %vm381, %v994, %v953
        %v996 = vrot.slane %v953, 4
        %v997 = vsel %vm381, %v977, %v996
        %v998 = vrot.slane %v985, 4
        %v999 = vsel %vm381, %v998, %v961
        %v1000 = vrot.slane %v961, 4
        %v1001 = vsel %vm381, %v985, %v1000
        %v1002 = vrot.slane %v989, 4
        %v1003 = vsel %vm381, %v1002, %v965
        %v1004 = vrot.slane %v965, 4
        %v1005 = vsel %vm381, %v989, %v1004
        %v1006 = vrot.slane %v995, 4
        %v1007 = vsel %vm381, %v1006, %v991
        %v1008 = vrot.slane %v991, 4
        %v1009 = vsel %vm381, %v995, %v1008
        %v1011 = vunpack.c.l.s4 1983009808
        %v1012 = vunpack.c.0.s8 %v1011
        %v1013 = vperm.slane %v1007, %v1012
        %v1015 = vunpack.c.l.s4 1983009808
        %v1016 = vunpack.c.0.s8 %v1015
        %v1017 = vperm.slane %v1009, %v1016
        %v1018 = vrot.slane %v997, 4
        %v1019 = vsel %vm381, %v1018, %v993
        %v1020 = vrot.slane %v993, 4
        %v1021 = vsel %vm381, %v997, %v1020
        %v1023 = vunpack.c.l.s4 1983009808
        %v1024 = vunpack.c.0.s8 %v1023
        %v1025 = vperm.slane %v1019, %v1024
        %v1027 = vunpack.c.l.s4 1983009808
        %v1028 = vunpack.c.0.s8 %v1027
        %v1029 = vperm.slane %v1021, %v1028
        %v1030 = vrot.slane %v1003, 4
        %v1031 = vsel %vm381, %v1030, %v999
        %v1032 = vrot.slane %v999, 4
        %v1033 = vsel %vm381, %v1003, %v1032
        %v1035 = vunpack.c.l.s4 1983009808
        %v1036 = vunpack.c.0.s8 %v1035
        %v1037 = vperm.slane %v1031, %v1036
        %v1039 = vunpack.c.l.s4 1983009808
        %v1040 = vunpack.c.0.s8 %v1039
        %v1041 = vperm.slane %v1033, %v1040
        %v1042 = vrot.slane %v1005, 4
        %v1043 = vsel %vm381, %v1042, %v1001
        %v1044 = vrot.slane %v1001, 4
        %v1045 = vsel %vm381, %v1005, %v1044
        %v1047 = vunpack.c.l.s4 1983009808
        %v1048 = vunpack.c.0.s8 %v1047
        %v1049 = vperm.slane %v1043, %v1048
        %v1051 = vunpack.c.l.s4 1983009808
        %v1052 = vunpack.c.0.s8 %v1051
        %v1053 = vperm.slane %v1045, %v1052
        %v1054 = vrot.slane %v1025, 4
        %v1055 = vsel %vm381, %v1054, %v1013
        %v1056 = vrot.slane %v1013, 4
        %v1057 = vsel %vm381, %v1025, %v1056
        %v1059 = vunpack.c.l.s4 1934713408
        %v1060 = vunpack.c.0.s8 %v1059
        %v1061 = vperm.slane %v1055, %v1060
        %v1063 = vunpack.c.l.s4 1934713408
        %v1064 = vunpack.c.0.s8 %v1063
        %v1065 = vperm.slane %v1057, %v1064
        %v1066 = vrot.slane %v1029, 4
        %v1067 = vsel %vm381, %v1066, %v1017
        %v1068 = vrot.slane %v1017, 4
        %v1069 = vsel %vm381, %v1029, %v1068
        %v1071 = vunpack.c.l.s4 1934713408
        %v1072 = vunpack.c.0.s8 %v1071
        %v1073 = vperm.slane %v1067, %v1072
        %v1075 = vunpack.c.l.s4 1934713408
        %v1076 = vunpack.c.0.s8 %v1075
        %v1077 = vperm.slane %v1069, %v1076
        %v1078 = vrot.slane %v1049, 4
        %v1079 = vsel %vm381, %v1078, %v1037
        %v1080 = vrot.slane %v1037, 4
        %v1081 = vsel %vm381, %v1049, %v1080
        %v1083 = vunpack.c.l.s4 1934713408
        %v1084 = vunpack.c.0.s8 %v1083
        %v1085 = vperm.slane %v1079, %v1084
        %v1087 = vunpack.c.l.s4 1934713408
        %v1088 = vunpack.c.0.s8 %v1087
        %v1089 = vperm.slane %v1081, %v1088
        %v1090 = vrot.slane %v1053, 4
        %v1091 = vsel %vm381, %v1090, %v1041
        %v1092 = vrot.slane %v1041, 4
        %v1093 = vsel %vm381, %v1053, %v1092
        %v1095 = vunpack.c.l.s4 1934713408
        %v1096 = vunpack.c.0.s8 %v1095
        %v1097 = vperm.slane %v1091, %v1096
        %v1099 = vunpack.c.l.s4 1934713408
        %v1100 = vunpack.c.0.s8 %v1099
        %v1101 = vperm.slane %v1093, %v1100
        %v1102 = vrot.slane %v1085, 4
        %v1103 = vsel %vm381, %v1102, %v1061
        %v1104 = vrot.slane %v1061, 4
        %v1105 = vsel %vm381, %v1085, %v1104
        %v1106 = vrot.slane %v1089, 4
        %v1107 = vsel %vm381, %v1106, %v1065
        %v1108 = vrot.slane %v1065, 4
        %v1109 = vsel %vm381, %v1089, %v1108
        %v1110 = vrot.slane %v1097, 4
        %v1111 = vsel %vm381, %v1110, %v1073
        %v1112 = vrot.slane %v1073, 4
        %v1113 = vsel %vm381, %v1097, %v1112
        %v1114 = vrot.slane %v1101, 4
        %v1115 = vsel %vm381, %v1114, %v1077
        %v1116 = vrot.slane %v1077, 4
        %v1117 = vsel %vm381, %v1101, %v1116
        %1118 = vst.msk [vmem:[%s324] sm:$0xff] %vm605, %v1103
        %1119 = vst.msk [vmem:[%s324 + $0x8] sm:$0xff] %vm605, %v1105
        %1120 = vst.msk [vmem:[%s324 + $0x10] sm:$0xff] %vm605, %v1107
        %1121 = vst.msk [vmem:[%s324 + $0x18] sm:$0xff] %vm605, %v1109
        %1122 = vst.msk [vmem:[%s324 + $0x20] sm:$0xff] %vm605, %v1111
        %1123 = vst.msk [vmem:[%s324 + $0x28] sm:$0xff] %vm605, %v1113
        %1124 = vst.msk [vmem:[%s324 + $0x30] sm:$0xff] %vm605, %v1115
        %1125 = vst.msk [vmem:[%s324 + $0x38] sm:$0xff] %vm605, %v1117
        %p1126 = scmp.lt.s32.totalorder %s25, 1
        %s1127 = scalar_select %p1126, %s25, 1
        %p1128 = scmp.lt.s32.totalorder %s26, 0
        %s1129 = scalar_select %p1128, %s26, 0
        %s1130 = smul.addr %s1127, 8
        %s1131 = sadd.s32 %s1129, %s1130
        %s1132 = smul.addr %s1131, 8
        %s1133 = scalar_lea.vmem %s3, %s1132
        %p1134 = scmp.lt.s32.totalorder %s25, 1
        %s1135 = scalar_select %p1134, %s25, 1
        %p1136 = scmp.lt.s32.totalorder %s26, 0
        %s1137 = scalar_select %p1136, %s26, 0
        %s1138 = smul.addr %s1135, 8
        %s1139 = sadd.s32 %s1137, %s1138
        %s1140 = smul.addr %s1139, 8
        %s1141 = scalar_lea.vmem %s4, %s1140
        %p1142 = scmp.lt.s32.totalorder %s25, 1
        %s1143 = scalar_select %p1142, %s25, 1
        %p1144 = scmp.lt.s32.totalorder %s26, 0
        %s1145 = scalar_select %p1144, %s26, 0
        %s1146 = smul.addr %s1143, 8
        %s1147 = sadd.s32 %s1145, %s1146
        %s1148 = smul.addr %s1147, 8
        %s1149 = scalar_lea.vmem %s5, %s1148
        // Predicated region
        $region41: #{tpu_custom_call.1} parent=31 // pred_check
          %p1150 = pneg %p123
        $region42: #{tpu_custom_call.1} parent=31 // pred_check_branch
          %1152 = sbr.rel (%p1150) target = $region44
        $region43: #{tpu_custom_call.1} parent=31 // pred_region
          _
        $region44: #{tpu_custom_call.1} parent=31 // pred_fallthru
          _
        // Predicated region
        $region45: #{tpu_custom_call.1} parent=31 // pred_check
          %p1153 = pneg %p151
        $region46: #{tpu_custom_call.1} parent=31 // pred_check_branch
          %1155 = sbr.rel (%p1153) target = $region48
        $region47: #{tpu_custom_call.1} parent=31 // pred_region
          _
        $region48: #{tpu_custom_call.1} parent=31 // pred_fallthru
          _
        // Predicated region
        $region49: #{tpu_custom_call.1} parent=31 // pred_check
          %p1156 = pneg %p179
        $region50: #{tpu_custom_call.1} parent=31 // pred_check_branch
          %1158 = sbr.rel (%p1156) target = $region52
        $region51: #{tpu_custom_call.1} parent=31 // pred_region
          _
        $region52: #{tpu_custom_call.1} parent=31 // pred_fallthru
          _
      $region32: #{tpu_custom_call.1} parent=5 // pred_fallthru
        _
      %p1159 = scmp.le.s32.totalorder 2, %s16
      // Predicated region
      $region53: #{tpu_custom_call.1} parent=5 // pred_check
        %p1160 = pneg %p1159
      $region54: #{tpu_custom_call.1} parent=5 // pred_check_branch
        %1162 = sbr.rel (%p1160) target = $region56
      $region55: #{tpu_custom_call.1} parent=5 // pred_region
        %s1163 = ssub.s32 %s16, 2
        // Predicated region
        $region57: #{tpu_custom_call.1} parent=55 // pred_check
          %p1164 = pneg %p129
        $region58: #{tpu_custom_call.1} parent=55 // pred_check_branch
          %1166 = sbr.rel (%p1164) target = $region60
        $region59: #{tpu_custom_call.1} parent=55 // pred_region
          %p1167 = scmp.lt.s32.totalorder %s27, 1
          %s1168 = scalar_select %p1167, %s27, 1
          %p1169 = scmp.lt.s32.totalorder %s28, 0
          %s1170 = scalar_select %p1169, %s28, 0
          %s1171 = smul.addr %s1168, 8
          %s1172 = sadd.s32 %s1170, %s1171
          %s1173 = smul.addr %s1172, 8
          %s1174 = scalar_lea.vmem %s3, %s1173
        $region60: #{tpu_custom_call.1} parent=55 // pred_fallthru
          _
        // Predicated region
        $region61: #{tpu_custom_call.1} parent=55 // pred_check
          %p1175 = pneg %p157
        $region62: #{tpu_custom_call.1} parent=55 // pred_check_branch
          %1177 = sbr.rel (%p1175) target = $region64
        $region63: #{tpu_custom_call.1} parent=55 // pred_region
          %p1178 = scmp.lt.s32.totalorder %s27, 1
          %s1179 = scalar_select %p1178, %s27, 1
          %p1180 = scmp.lt.s32.totalorder %s28, 0
          %s1181 = scalar_select %p1180, %s28, 0
          %s1182 = smul.addr %s1179, 8
          %s1183 = sadd.s32 %s1181, %s1182
          %s1184 = smul.addr %s1183, 8
          %s1185 = scalar_lea.vmem %s4, %s1184
        $region64: #{tpu_custom_call.1} parent=55 // pred_fallthru
          _
        // Predicated region
        $region65: #{tpu_custom_call.1} parent=55 // pred_check
          %p1186 = pneg %p185
        $region66: #{tpu_custom_call.1} parent=55 // pred_check_branch
          %1188 = sbr.rel (%p1186) target = $region68
        $region67: #{tpu_custom_call.1} parent=55 // pred_region
          %p1189 = scmp.lt.s32.totalorder %s27, 1
          %s1190 = scalar_select %p1189, %s27, 1
          %p1191 = scmp.lt.s32.totalorder %s28, 0
          %s1192 = scalar_select %p1191, %s28, 0
          %s1193 = smul.addr %s1190, 8
          %s1194 = sadd.s32 %s1192, %s1193
          %s1195 = smul.addr %s1194, 8
          %s1196 = scalar_lea.vmem %s5, %s1195
        $region68: #{tpu_custom_call.1} parent=55 // pred_fallthru
          _
      $region56: #{tpu_custom_call.1} parent=5 // pred_fallthru
        _
    $region6: #{tpu_custom_call.1} parent=1 // loop_footer
      %s20 = sadd.s32 1, %s16
    $region7: #{tpu_custom_call.1} parent=1 // loop_footer_branch
      %15 = sbr.rel target = $region3
    $region8: #{tpu_custom_call.1} parent=1 // loop_exit
      _
    %1197 = vsyncpa [#allocation3], 1
    %s1198 = scalar_lea.sflag [#allocation3], 1
    %1199 = vsyncpa %s1198, 1
    %1200 = vsyncpa [#allocation5], 1

</llo_original>
